<compile_context>
chip_gen: v7x
topology: tpu7x:2x2x1
jax: 0.10.0
libtpu: 0.0.40
codegen_flags: <defaults>
</compile_context>

<pallas_src>
import functools

import jax
import jax.numpy as jnp
from jax.experimental import pallas as pl
from jax.experimental.pallas import tpu as pltpu


def _shift_lanes(tile, s, length):
    """out[:, j] = tile[:, j + s], zero-filled outside [0, length).

    Implements the conv tap shift with zero padding using an XLU lane roll
    plus a VPU mask (no unaligned lane slices, no HBM halo).
    """
    if s == 0:
        return tile
    rolled = pltpu.roll(tile, shift=(-s) % length, axis=1)
    col = jax.lax.broadcasted_iota(jnp.int32, tile.shape, 1)
    valid = (col + s >= 0) & (col + s < length)
    return jnp.where(valid, rolled, jnp.zeros_like(rolled))


def convlstm_kernel(wx_ref, wh_ref, b_ref, x_ref, h_ref, c_ref,
                    h_out_ref, c_out_ref, *, hidden_dim, kernel_size, block_b):
    """One batch block per grid step, native (B, C, L) layout.

    wx_ref   : (K, 4H, Cin) bf16   per-tap input-weight   (resident)
    wh_ref   : (K, 4H, H)   bf16   per-tap hidden-weight  (resident)
    b_ref    : (4H, 1)      f32    bias                   (resident)
    x_ref    : (BB, Cin, L) model dtype
    h_ref    : (BB, H, L)   model dtype
    c_ref    : (BB, H, L)   model dtype
    h_out_ref: (BB, H, L)   model dtype
    c_out_ref: (BB, H, L)   model dtype
    """
    H = hidden_dim
    K = kernel_size
    pad = K // 2
    L = x_ref.shape[-1]

    # Bias folded into the accumulator init; broadcast hoisted out of loops.
    acc0 = jnp.broadcast_to(b_ref[...], (4 * H, L)).astype(jnp.float32)

    for bb in range(block_b):                       # static unroll
        x = x_ref[bb]                               # (Cin, L)
        h = h_ref[bb]                               # (H,   L)

        acc = acc0
        for t in range(K):                          # taps shifted in VMEM
            s = t - pad
            xs = _shift_lanes(x, s, L).astype(jnp.bfloat16)
            hs = _shift_lanes(h, s, L).astype(jnp.bfloat16)
            acc = acc + jnp.dot(wx_ref[t], xs,
                                preferred_element_type=jnp.float32)
            acc = acc + jnp.dot(wh_ref[t], hs,
                                preferred_element_type=jnp.float32)

        # Gates in f32 (EUP/VPU); slices are sublane-aligned since H % 8 == 0.
        i = jax.nn.sigmoid(acc[0 * H:1 * H])
        f = jax.nn.sigmoid(acc[1 * H:2 * H])
        o = jax.nn.sigmoid(acc[2 * H:3 * H])
        g = jnp.tanh(acc[3 * H:4 * H])

        c_cur = c_ref[bb].astype(jnp.float32)
        c_next = f * c_cur + i * g
        h_next = o * jnp.tanh(c_next)

        h_out_ref[bb] = h_next.astype(h_out_ref.dtype)
        c_out_ref[bb] = c_next.astype(c_out_ref.dtype)


def _pick_batch_block(batch, length, target_lanes=1024):
    """Batches per grid step: prefer >= 2 grid steps (two v7x TensorCores get
    work) and a per-step lane footprint of <= ~target_lanes."""
    candidates = [bb for bb in range(1, batch + 1) if batch % bb == 0]
    multi = [bb for bb in candidates if batch // bb >= 2]
    pool = multi if multi else candidates
    ok = [bb for bb in pool if bb * length <= target_lanes] or [pool[0]]
    return max(ok)


def conv_lstm_cell_1d(x, h_cur, c_cur, weight, bias, *, kernel_size):
    """JAX wrapper. All heavy data stays in native layout; only the tiny
    conv weight/bias are re-laid-out (negligible bytes).

    x      : (B, Cin, L)
    h_cur  : (B, H, L)
    c_cur  : (B, H, L)
    weight : (4H, Cin+H, K)   (PyTorch Conv1d layout: out, in, k)
    bias   : (4H,)
    """
    # padding = K // 2 only reproduces PyTorch's same-length output for odd K.
    assert kernel_size % 2 == 1, "ConvLSTMCell1D kernel requires odd kernel_size"

    B, Cin, L = x.shape
    H = h_cur.shape[1]
    assert H % 8 == 0, "hidden_dim must be a multiple of 8 (sublane alignment)"
    K = kernel_size
    Ctot = Cin + H
    out_dtype = x.dtype

    # Tiny weight re-layout: per-tap (4H, C) matrices, bf16 for the MXU.
    wx = jnp.transpose(weight[:, :Cin, :], (2, 0, 1)).astype(jnp.bfloat16)  # (K,4H,Cin)
    wh = jnp.transpose(weight[:, Cin:, :], (2, 0, 1)).astype(jnp.bfloat16)  # (K,4H,H)
    b2 = bias.astype(jnp.float32).reshape(4 * H, 1)

    BB = _pick_batch_block(B, L)
    grid = (B // BB,)

    itemsize = jnp.dtype(out_dtype).itemsize
    weight_bytes = wx.nbytes + wh.nbytes + b2.nbytes
    per_step_bytes = BB * L * itemsize * (Cin + 4 * H)   # x + h + c + 2 outs
    vmem_limit = int(min(48 * 1024 * 1024,
                         max(32 * 1024 * 1024, 6 * per_step_bytes + weight_bytes)))

    cost = pl.CostEstimate(
        flops=2 * (4 * H) * Ctot * K * B * L,
        transcendentals=5 * H * B * L,                    # 3 sigmoid + 2 tanh
        bytes_accessed=(x.nbytes + h_cur.nbytes + c_cur.nbytes + weight_bytes
                        + 2 * B * H * L * itemsize))

    kernel = functools.partial(convlstm_kernel, hidden_dim=H,
                               kernel_size=K, block_b=BB)

    h_next, c_next = pl.pallas_call(
        kernel,
        out_shape=(jax.ShapeDtypeStruct((B, H, L), out_dtype),
                   jax.ShapeDtypeStruct((B, H, L), out_dtype)),
        grid_spec=pltpu.PrefetchScalarGridSpec(
            num_scalar_prefetch=0,
            grid=grid,
            in_specs=[
                pl.BlockSpec((K, 4 * H, Cin), lambda b: (0, 0, 0)),  # wx (resident)
                pl.BlockSpec((K, 4 * H, H), lambda b: (0, 0, 0)),    # wh (resident)
                pl.BlockSpec((4 * H, 1), lambda b: (0, 0)),          # bias (resident)
                pl.BlockSpec((BB, Cin, L), lambda b: (b, 0, 0)),     # x block
                pl.BlockSpec((BB, H, L), lambda b: (b, 0, 0)),       # h block
                pl.BlockSpec((BB, H, L), lambda b: (b, 0, 0)),       # c block
            ],
            out_specs=[
                pl.BlockSpec((BB, H, L), lambda b: (b, 0, 0)),       # h_next
                pl.BlockSpec((BB, H, L), lambda b: (b, 0, 0)),       # c_next
            ],
        ),
        compiler_params=pltpu.CompilerParams(
            dimension_semantics=("parallel",),
            vmem_limit_bytes=vmem_limit),
        cost_estimate=cost,
    )(wx, wh, b2, x, h_cur, c_cur)

    return h_next, c_next


def reference_conv_lstm(x, h_cur, c_cur, weight, bias, *, kernel_size):
    """Pure-JAX f32 reference mirroring the PyTorch forward."""
    pad = kernel_size // 2
    combined = jnp.concatenate([x, h_cur], axis=1)
    conv_out = jax.lax.conv_general_dilated(
        combined, weight, window_strides=(1,), padding=[(pad, pad)],
        dimension_numbers=("NCH", "OIH", "NCH"))
    conv_out = conv_out + bias[None, :, None]
    cc_i, cc_f, cc_o, cc_g = jnp.split(conv_out, 4, axis=1)
    i = jax.nn.sigmoid(cc_i)
    f = jax.nn.sigmoid(cc_f)
    o = jax.nn.sigmoid(cc_o)
    g = jnp.tanh(cc_g)
    c_next = f * c_cur + i * g
    h_next = o * jnp.tanh(c_next)
    return h_next, c_next


if __name__ == "__main__":
    # Small shapes consistent with the module's forward (NCL Conv1d layout).
    B, Cin, H, L, K = 2, 4, 32, 128, 3
    Ctot = Cin + H

    key = jax.random.PRNGKey(0)
    k_x, k_h, k_c, k_w, k_b = jax.random.split(key, 5)

    x = jax.random.normal(k_x, (B, Cin, L), dtype=jnp.float32)
    h_cur = jax.random.normal(k_h, (B, H, L), dtype=jnp.float32)
    c_cur = jax.random.normal(k_c, (B, H, L), dtype=jnp.float32)

    # Deterministic Conv1d-style init (uniform in +/- 1/sqrt(fan_in)).
    bound = 1.0 / jnp.sqrt(float(Ctot * K))
    weight = jax.random.uniform(k_w, (4 * H, Ctot, K), dtype=jnp.float32,
                                minval=-bound, maxval=bound)
    bias = jax.random.uniform(k_b, (4 * H,), dtype=jnp.float32,
                              minval=-bound, maxval=bound)

    h_next, c_next = conv_lstm_cell_1d(x, h_cur, c_cur, weight, bias,
                                       kernel_size=K)
    jax.block_until_ready((h_next, c_next))

    h_ref, c_ref = reference_conv_lstm(x, h_cur, c_cur, weight, bias,
                                       kernel_size=K)
    # bf16 matmul operands (f32 accumulation) => slightly looser tolerance.
    assert jnp.allclose(h_next, h_ref, atol=2e-2, rtol=2e-2)
    assert jnp.allclose(c_next, c_ref, atol=2e-2, rtol=2e-2)

    print("KERNEL_OK")
</pallas_src>

<mosaic_0001>
module attributes {stable_mosaic.version = 11 : i64} {
  func.func @convlstm_kernel(%arg0: i32, %arg1: memref<3x128x4xbf16, #tpu.memory_space<vmem>>, %arg2: memref<3x128x32xbf16, #tpu.memory_space<vmem>>, %arg3: memref<128x1xf32, #tpu.memory_space<vmem>>, %arg4: memref<1x4x128xf32, #tpu.memory_space<vmem>>, %arg5: memref<1x32x128xf32, #tpu.memory_space<vmem>>, %arg6: memref<1x32x128xf32, #tpu.memory_space<vmem>>, %arg7: memref<1x32x128xf32, #tpu.memory_space<vmem>>, %arg8: memref<1x32x128xf32, #tpu.memory_space<vmem>>) attributes {dimension_semantics = [#tpu.dimension_semantics<parallel>], iteration_bounds = array<i64: 2>, scalar_prefetch = 0 : i64, scratch_operands = 0 : i64, tpu.core_type = #tpu.core_type<tc>, window_params = [{pipeline_mode = #tpu.pipeline_mode<synchronous>, transform_indices = @transform_0, window_bounds = array<i64: 3, 128, 4>}, {pipeline_mode = #tpu.pipeline_mode<synchronous>, transform_indices = @transform_1, window_bounds = array<i64: 3, 128, 32>}, {pipeline_mode = #tpu.pipeline_mode<synchronous>, transform_indices = @transform_2, window_bounds = array<i64: 128, 1>}, {transform_indices = @transform_3, window_bounds = array<i64: 1, 4, 128>}, {transform_indices = @transform_4, window_bounds = array<i64: 1, 32, 128>}, {transform_indices = @transform_5, window_bounds = array<i64: 1, 32, 128>}, {transform_indices = @transform_6, window_bounds = array<i64: 1, 32, 128>}, {transform_indices = @transform_7, window_bounds = array<i64: 1, 32, 128>}]} {
    %c0 = arith.constant 0 : index
    %c0_0 = arith.constant 0 : index
    %0 = vector.load %arg3[%c0, %c0_0] : memref<128x1xf32, #tpu.memory_space<vmem>>, vector<128x1xf32>
    %1 = vector.shape_cast %0 : vector<128x1xf32> to vector<128x1xf32>
    %2 = vector.broadcast %1 : vector<128x1xf32> to vector<128x128xf32>
    %c0_1 = arith.constant 0 : index
    %c0_2 = arith.constant 0 : index
    %c0_3 = arith.constant 0 : index
    %3 = vector.load %arg4[%c0_1, %c0_2, %c0_3] : memref<1x4x128xf32, #tpu.memory_space<vmem>>, vector<1x4x128xf32>
    %4 = vector.shape_cast %3 : vector<1x4x128xf32> to vector<4x128xf32>
    %c0_4 = arith.constant 0 : index
    %c0_5 = arith.constant 0 : index
    %c0_6 = arith.constant 0 : index
    %5 = vector.load %arg5[%c0_4, %c0_5, %c0_6] : memref<1x32x128xf32, #tpu.memory_space<vmem>>, vector<1x32x128xf32>
    %6 = vector.shape_cast %5 : vector<1x32x128xf32> to vector<32x128xf32>
    %c1_i32 = arith.constant 1 : i32
    %7 = tpu.dynamic_rotate %4 by %c1_i32 dim 1 : vector<4x128xf32>, i32 -> vector<4x128xf32>
    %8 = tpu.iota {dimensions = array<i32: 1>} : vector<4x128xi32>
    %c-1_i32 = arith.constant -1 : i32
    %9 = vector.broadcast %c-1_i32 : i32 to vector<4x128xi32>
    %10 = arith.addi %8, %9 : vector<4x128xi32>
    %c0_i32 = arith.constant 0 : i32
    %11 = vector.broadcast %c0_i32 : i32 to vector<4x128xi32>
    %12 = arith.cmpi sge, %10, %11 : vector<4x128xi32>
    %c-1_i32_7 = arith.constant -1 : i32
    %13 = vector.broadcast %c-1_i32_7 : i32 to vector<4x128xi32>
    %14 = arith.addi %8, %13 : vector<4x128xi32>
    %c128_i32 = arith.constant 128 : i32
    %15 = vector.broadcast %c128_i32 : i32 to vector<4x128xi32>
    %16 = arith.cmpi slt, %14, %15 : vector<4x128xi32>
    %17 = arith.andi %12, %16 : vector<4x128xi1>
    %cst = arith.constant 0.000000e+00 : f32
    %18 = vector.broadcast %cst : f32 to vector<4x128xf32>
    %19 = arith.select %17, %7, %18 : vector<4x128xi1>, vector<4x128xf32>
    %20 = arith.truncf %19 : vector<4x128xf32> to vector<4x128xbf16>
    %c1_i32_8 = arith.constant 1 : i32
    %21 = tpu.dynamic_rotate %6 by %c1_i32_8 dim 1 : vector<32x128xf32>, i32 -> vector<32x128xf32>
    %22 = tpu.iota {dimensions = array<i32: 1>} : vector<32x128xi32>
    %c-1_i32_9 = arith.constant -1 : i32
    %23 = vector.broadcast %c-1_i32_9 : i32 to vector<32x128xi32>
    %24 = arith.addi %22, %23 : vector<32x128xi32>
    %c0_i32_10 = arith.constant 0 : i32
    %25 = vector.broadcast %c0_i32_10 : i32 to vector<32x128xi32>
    %26 = arith.cmpi sge, %24, %25 : vector<32x128xi32>
    %c-1_i32_11 = arith.constant -1 : i32
    %27 = vector.broadcast %c-1_i32_11 : i32 to vector<32x128xi32>
    %28 = arith.addi %22, %27 : vector<32x128xi32>
    %c128_i32_12 = arith.constant 128 : i32
    %29 = vector.broadcast %c128_i32_12 : i32 to vector<32x128xi32>
    %30 = arith.cmpi slt, %28, %29 : vector<32x128xi32>
    %31 = arith.andi %26, %30 : vector<32x128xi1>
    %cst_13 = arith.constant 0.000000e+00 : f32
    %32 = vector.broadcast %cst_13 : f32 to vector<32x128xf32>
    %33 = arith.select %31, %21, %32 : vector<32x128xi1>, vector<32x128xf32>
    %34 = arith.truncf %33 : vector<32x128xf32> to vector<32x128xbf16>
    %c0_14 = arith.constant 0 : index
    %c0_15 = arith.constant 0 : index
    %c0_16 = arith.constant 0 : index
    %35 = vector.load %arg1[%c0_14, %c0_15, %c0_16] : memref<3x128x4xbf16, #tpu.memory_space<vmem>>, vector<1x128x4xbf16>
    %36 = vector.shape_cast %35 : vector<1x128x4xbf16> to vector<128x4xbf16>
    %cst_17 = arith.constant dense<0.000000e+00> : vector<128x128xf32>
    %37 = tpu.matmul %36, %20, %cst_17 {dimension_numbers = #tpu.dot_dimension_numbers<[1], [0], [0], [1], [0, 0, 1, 1], [], []>} : vector<128x4xbf16>, vector<4x128xbf16>, vector<128x128xf32> -> vector<128x128xf32>
    %38 = arith.addf %2, %37 : vector<128x128xf32>
    %c0_18 = arith.constant 0 : index
    %c0_19 = arith.constant 0 : index
    %c0_20 = arith.constant 0 : index
    %39 = vector.load %arg2[%c0_18, %c0_19, %c0_20] : memref<3x128x32xbf16, #tpu.memory_space<vmem>>, vector<1x128x32xbf16>
    %40 = vector.shape_cast %39 : vector<1x128x32xbf16> to vector<128x32xbf16>
    %cst_21 = arith.constant dense<0.000000e+00> : vector<128x128xf32>
    %41 = tpu.matmul %40, %34, %cst_21 {dimension_numbers = #tpu.dot_dimension_numbers<[1], [0], [0], [1], [0, 0, 1, 1], [], []>} : vector<128x32xbf16>, vector<32x128xbf16>, vector<128x128xf32> -> vector<128x128xf32>
    %42 = arith.addf %38, %41 : vector<128x128xf32>
    %43 = arith.truncf %4 : vector<4x128xf32> to vector<4x128xbf16>
    %44 = arith.truncf %6 : vector<32x128xf32> to vector<32x128xbf16>
    %c1 = arith.constant 1 : index
    %c0_22 = arith.constant 0 : index
    %c0_23 = arith.constant 0 : index
    %45 = vector.load %arg1[%c1, %c0_22, %c0_23] : memref<3x128x4xbf16, #tpu.memory_space<vmem>>, vector<1x128x4xbf16>
    %46 = vector.shape_cast %45 : vector<1x128x4xbf16> to vector<128x4xbf16>
    %cst_24 = arith.constant dense<0.000000e+00> : vector<128x128xf32>
    %47 = tpu.matmul %46, %43, %cst_24 {dimension_numbers = #tpu.dot_dimension_numbers<[1], [0], [0], [1], [0, 0, 1, 1], [], []>} : vector<128x4xbf16>, vector<4x128xbf16>, vector<128x128xf32> -> vector<128x128xf32>
    %48 = arith.addf %42, %47 : vector<128x128xf32>
    %c1_25 = arith.constant 1 : index
    %c0_26 = arith.constant 0 : index
    %c0_27 = arith.constant 0 : index
    %49 = vector.load %arg2[%c1_25, %c0_26, %c0_27] : memref<3x128x32xbf16, #tpu.memory_space<vmem>>, vector<1x128x32xbf16>
    %50 = vector.shape_cast %49 : vector<1x128x32xbf16> to vector<128x32xbf16>
    %cst_28 = arith.constant dense<0.000000e+00> : vector<128x128xf32>
    %51 = tpu.matmul %50, %44, %cst_28 {dimension_numbers = #tpu.dot_dimension_numbers<[1], [0], [0], [1], [0, 0, 1, 1], [], []>} : vector<128x32xbf16>, vector<32x128xbf16>, vector<128x128xf32> -> vector<128x128xf32>
    %52 = arith.addf %48, %51 : vector<128x128xf32>
    %c127_i32 = arith.constant 127 : i32
    %53 = tpu.dynamic_rotate %4 by %c127_i32 dim 1 : vector<4x128xf32>, i32 -> vector<4x128xf32>
    %54 = tpu.iota {dimensions = array<i32: 1>} : vector<4x128xi32>
    %c1_i32_29 = arith.constant 1 : i32
    %55 = vector.broadcast %c1_i32_29 : i32 to vector<4x128xi32>
    %56 = arith.addi %54, %55 : vector<4x128xi32>
    %c0_i32_30 = arith.constant 0 : i32
    %57 = vector.broadcast %c0_i32_30 : i32 to vector<4x128xi32>
    %58 = arith.cmpi sge, %56, %57 : vector<4x128xi32>
    %c1_i32_31 = arith.constant 1 : i32
    %59 = vector.broadcast %c1_i32_31 : i32 to vector<4x128xi32>
    %60 = arith.addi %54, %59 : vector<4x128xi32>
    %c128_i32_32 = arith.constant 128 : i32
    %61 = vector.broadcast %c128_i32_32 : i32 to vector<4x128xi32>
    %62 = arith.cmpi slt, %60, %61 : vector<4x128xi32>
    %63 = arith.andi %58, %62 : vector<4x128xi1>
    %cst_33 = arith.constant 0.000000e+00 : f32
    %64 = vector.broadcast %cst_33 : f32 to vector<4x128xf32>
    %65 = arith.select %63, %53, %64 : vector<4x128xi1>, vector<4x128xf32>
    %66 = arith.truncf %65 : vector<4x128xf32> to vector<4x128xbf16>
    %c127_i32_34 = arith.constant 127 : i32
    %67 = tpu.dynamic_rotate %6 by %c127_i32_34 dim 1 : vector<32x128xf32>, i32 -> vector<32x128xf32>
    %68 = tpu.iota {dimensions = array<i32: 1>} : vector<32x128xi32>
    %c1_i32_35 = arith.constant 1 : i32
    %69 = vector.broadcast %c1_i32_35 : i32 to vector<32x128xi32>
    %70 = arith.addi %68, %69 : vector<32x128xi32>
    %c0_i32_36 = arith.constant 0 : i32
    %71 = vector.broadcast %c0_i32_36 : i32 to vector<32x128xi32>
    %72 = arith.cmpi sge, %70, %71 : vector<32x128xi32>
    %c1_i32_37 = arith.constant 1 : i32
    %73 = vector.broadcast %c1_i32_37 : i32 to vector<32x128xi32>
    %74 = arith.addi %68, %73 : vector<32x128xi32>
    %c128_i32_38 = arith.constant 128 : i32
    %75 = vector.broadcast %c128_i32_38 : i32 to vector<32x128xi32>
    %76 = arith.cmpi slt, %74, %75 : vector<32x128xi32>
    %77 = arith.andi %72, %76 : vector<32x128xi1>
    %cst_39 = arith.constant 0.000000e+00 : f32
    %78 = vector.broadcast %cst_39 : f32 to vector<32x128xf32>
    %79 = arith.select %77, %67, %78 : vector<32x128xi1>, vector<32x128xf32>
    %80 = arith.truncf %79 : vector<32x128xf32> to vector<32x128xbf16>
    %c2 = arith.constant 2 : index
    %c0_40 = arith.constant 0 : index
    %c0_41 = arith.constant 0 : index
    %81 = vector.load %arg1[%c2, %c0_40, %c0_41] : memref<3x128x4xbf16, #tpu.memory_space<vmem>>, vector<1x128x4xbf16>
    %82 = vector.shape_cast %81 : vector<1x128x4xbf16> to vector<128x4xbf16>
    %cst_42 = arith.constant dense<0.000000e+00> : vector<128x128xf32>
    %83 = tpu.matmul %82, %66, %cst_42 {dimension_numbers = #tpu.dot_dimension_numbers<[1], [0], [0], [1], [0, 0, 1, 1], [], []>} : vector<128x4xbf16>, vector<4x128xbf16>, vector<128x128xf32> -> vector<128x128xf32>
    %84 = arith.addf %52, %83 : vector<128x128xf32>
    %c2_43 = arith.constant 2 : index
    %c0_44 = arith.constant 0 : index
    %c0_45 = arith.constant 0 : index
    %85 = vector.load %arg2[%c2_43, %c0_44, %c0_45] : memref<3x128x32xbf16, #tpu.memory_space<vmem>>, vector<1x128x32xbf16>
    %86 = vector.shape_cast %85 : vector<1x128x32xbf16> to vector<128x32xbf16>
    %cst_46 = arith.constant dense<0.000000e+00> : vector<128x128xf32>
    %87 = tpu.matmul %86, %80, %cst_46 {dimension_numbers = #tpu.dot_dimension_numbers<[1], [0], [0], [1], [0, 0, 1, 1], [], []>} : vector<128x32xbf16>, vector<32x128xbf16>, vector<128x128xf32> -> vector<128x128xf32>
    %88 = arith.addf %84, %87 : vector<128x128xf32>
    %89 = vector.extract_strided_slice %88 {offsets = [0, 0], sizes = [32, 128], strides = [1, 1]} : vector<128x128xf32> to vector<32x128xf32>
    %90 = arith.negf %89 : vector<32x128xf32>
    %91 = math.exp %90 : vector<32x128xf32>
    %cst_47 = arith.constant 1.000000e+00 : f32
    %92 = vector.broadcast %cst_47 : f32 to vector<32x128xf32>
    %93 = arith.addf %92, %91 : vector<32x128xf32>
    %94 = arith.divf %92, %93 : vector<32x128xf32>
    %95 = vector.extract_strided_slice %88 {offsets = [32, 0], sizes = [32, 128], strides = [1, 1]} : vector<128x128xf32> to vector<32x128xf32>
    %96 = arith.negf %95 : vector<32x128xf32>
    %97 = math.exp %96 : vector<32x128xf32>
    %cst_48 = arith.constant 1.000000e+00 : f32
    %98 = vector.broadcast %cst_48 : f32 to vector<32x128xf32>
    %99 = arith.addf %98, %97 : vector<32x128xf32>
    %100 = arith.divf %98, %99 : vector<32x128xf32>
    %101 = vector.extract_strided_slice %88 {offsets = [64, 0], sizes = [32, 128], strides = [1, 1]} : vector<128x128xf32> to vector<32x128xf32>
    %102 = arith.negf %101 : vector<32x128xf32>
    %103 = math.exp %102 : vector<32x128xf32>
    %cst_49 = arith.constant 1.000000e+00 : f32
    %104 = vector.broadcast %cst_49 : f32 to vector<32x128xf32>
    %105 = arith.addf %104, %103 : vector<32x128xf32>
    %106 = arith.divf %104, %105 : vector<32x128xf32>
    %107 = vector.extract_strided_slice %88 {offsets = [96, 0], sizes = [32, 128], strides = [1, 1]} : vector<128x128xf32> to vector<32x128xf32>
    %108 = math.tanh %107 : vector<32x128xf32>
    %c0_50 = arith.constant 0 : index
    %c0_51 = arith.constant 0 : index
    %c0_52 = arith.constant 0 : index
    %109 = vector.load %arg6[%c0_50, %c0_51, %c0_52] : memref<1x32x128xf32, #tpu.memory_space<vmem>>, vector<1x32x128xf32>
    %110 = vector.shape_cast %109 : vector<1x32x128xf32> to vector<32x128xf32>
    %111 = arith.mulf %100, %110 : vector<32x128xf32>
    %112 = arith.mulf %94, %108 : vector<32x128xf32>
    %113 = arith.addf %111, %112 : vector<32x128xf32>
    %114 = math.tanh %113 : vector<32x128xf32>
    %115 = arith.mulf %106, %114 : vector<32x128xf32>
    %c0_53 = arith.constant 0 : index
    %c0_54 = arith.constant 0 : index
    %c0_55 = arith.constant 0 : index
    %116 = vector.load %arg7[%c0_53, %c0_54, %c0_55] : memref<1x32x128xf32, #tpu.memory_space<vmem>>, vector<1x32x128xf32>
    %117 = vector.shape_cast %116 : vector<1x32x128xf32> to vector<32x128xf32>
    %118 = vector.shape_cast %115 : vector<32x128xf32> to vector<1x32x128xf32>
    tpu.vector_store %arg7[%c0_53, %c0_54, %c0_55], %118 {strides = array<i32>} : memref<1x32x128xf32, #tpu.memory_space<vmem>>, vector<1x32x128xf32>,
    %c0_56 = arith.constant 0 : index
    %c0_57 = arith.constant 0 : index
    %c0_58 = arith.constant 0 : index
    %119 = vector.load %arg8[%c0_56, %c0_57, %c0_58] : memref<1x32x128xf32, #tpu.memory_space<vmem>>, vector<1x32x128xf32>
    %120 = vector.shape_cast %119 : vector<1x32x128xf32> to vector<32x128xf32>
    %121 = vector.shape_cast %113 : vector<32x128xf32> to vector<1x32x128xf32>
    tpu.vector_store %arg8[%c0_56, %c0_57, %c0_58], %121 {strides = array<i32>} : memref<1x32x128xf32, #tpu.memory_space<vmem>>, vector<1x32x128xf32>,
    return
  }
  func.func @transform_0(%arg0: i32) -> (i32, i32, i32) {
    %c0_i32 = arith.constant 0 : i32
    %c0_i32_0 = arith.constant 0 : i32
    %c0_i32_1 = arith.constant 0 : i32
    %c0_i32_2 = arith.constant 0 : i32
    return %c0_i32, %c0_i32_0, %c0_i32_1 : i32, i32, i32
  }
  func.func @transform_1(%arg0: i32) -> (i32, i32, i32) {
    %c0_i32 = arith.constant 0 : i32
    %c0_i32_0 = arith.constant 0 : i32
    %c0_i32_1 = arith.constant 0 : i32
    %c0_i32_2 = arith.constant 0 : i32
    return %c0_i32, %c0_i32_0, %c0_i32_1 : i32, i32, i32
  }
  func.func @transform_2(%arg0: i32) -> (i32, i32) {
    %c0_i32 = arith.constant 0 : i32
    %c0_i32_0 = arith.constant 0 : i32
    %c0_i32_1 = arith.constant 0 : i32
    return %c0_i32, %c0_i32_0 : i32, i32
  }
  func.func @transform_3(%arg0: i32) -> (i32, i32, i32) {
    %c0_i32 = arith.constant 0 : i32
    %c0_i32_0 = arith.constant 0 : i32
    %c0_i32_1 = arith.constant 0 : i32
    return %arg0, %c0_i32, %c0_i32_0 : i32, i32, i32
  }
  func.func @transform_4(%arg0: i32) -> (i32, i32, i32) {
    %c0_i32 = arith.constant 0 : i32
    %c0_i32_0 = arith.constant 0 : i32
    %c0_i32_1 = arith.constant 0 : i32
    return %arg0, %c0_i32, %c0_i32_0 : i32, i32, i32
  }
  func.func @transform_5(%arg0: i32) -> (i32, i32, i32) {
    %c0_i32 = arith.constant 0 : i32
    %c0_i32_0 = arith.constant 0 : i32
    %c0_i32_1 = arith.constant 0 : i32
    return %arg0, %c0_i32, %c0_i32_0 : i32, i32, i32
  }
  func.func @transform_6(%arg0: i32) -> (i32, i32, i32) {
    %c0_i32 = arith.constant 0 : i32
    %c0_i32_0 = arith.constant 0 : i32
    %c0_i32_1 = arith.constant 0 : i32
    return %arg0, %c0_i32, %c0_i32_0 : i32, i32, i32
  }
  func.func @transform_7(%arg0: i32) -> (i32, i32, i32) {
    %c0_i32 = arith.constant 0 : i32
    %c0_i32_0 = arith.constant 0 : i32
    %c0_i32_1 = arith.constant 0 : i32
    return %arg0, %c0_i32, %c0_i32_0 : i32, i32, i32
  }
}

</mosaic_0001>

<llo_original>
// kernel: tpu_custom_call.1
$region0: #{tpu_custom_call.1}
  #allocation0 [shape = 'u32[]', space=smem, size = 0x4, offset = 0x4, fixed_abs, tag = 'smem constant byte address 0x4 - core index']
  #allocation1 [shape = 'u32[144,128]{1,0:T(1,128)}', space=vmem, size = 0x12000, scoped, tag = 'internal scratch']
  %s0 = inlined_call_operand.vmem [shape: bf16[3,128,4], index: 0, kind: input, shape index: {}]
  %s1 = inlined_call_operand.vmem [shape: bf16[3,128,32], index: 1, kind: input, shape index: {}]
  %s2 = inlined_call_operand.vmem [shape: f32[128,1], index: 2, kind: input, shape index: {}]
  %s3 = inlined_call_operand.vmem [shape: f32[2,4,128], index: 3, kind: input, shape index: {}]
  %s4 = inlined_call_operand.vmem [shape: f32[2,32,128], index: 4, kind: input, shape index: {}]
  %s5 = inlined_call_operand.vmem [shape: f32[2,32,128], index: 5, kind: input, shape index: {}]
  %s6 = inlined_call_operand.hbm [shape: f32[2,32,128], index: 6, kind: output, shape index: {0}]
  %s7 = inlined_call_operand.hbm [shape: f32[2,32,128], index: 7, kind: output, shape index: {1}]
  %8 = xla_tuple %s6, %s7
  %s9 = sld [smem:[#allocation0]]
  $region65: #{tpu_custom_call.1} parent=0
    _
  %s11 = ssub.s32 1, %s9
  %s12 = scalar_select 0, %s11, %s9
  $region1: #{tpu_custom_call.1} parent=0
    #allocation2 [shape = 'u8[32768]{0}', space=vmem, size = 0x8000, scoped, tag = 'output window, operand 0']
    #allocation3 [shape = 's32[2]{0}', space=sflag, size = 0x8, scoped, tag = 'scoped memory for tpu_custom_call.1']
    #allocation4 [shape = 'u8[32768]{0}', space=vmem, size = 0x8000, scoped, tag = 'output window, operand 1']
    #allocation5 [shape = 's32[2]{0}', space=sflag, size = 0x8, scoped, tag = 'scoped memory for tpu_custom_call.1']
    %13 = vsyncpa [#allocation3], 0
    %s14 = scalar_lea.sflag [#allocation3], 1
    %15 = vsyncpa %s14, 0
    %16 = vsyncpa [#allocation5], 0
    %s17 = scalar_lea.sflag [#allocation5], 1
    %18 = vsyncpa %s17, 0
    loop: start=0, step=1, limit=4
    $region2: #{tpu_custom_call.1} parent=1 // loop_pre_header
      _
    $region3: #{tpu_custom_call.1} parent=1 // loop_header
      %s20 = sphi 0, %s24
      %p21 = scmp.ge.s32.totalorder %s20, 4
      %s28 = sphi 0, %s28
      %s30 = sphi 0, %s28
      %s31 = sphi 0, %s30
      %s45 = sphi 0, %s31
      %s49 = sphi 0, %s49
      %s51 = sphi 0, %s49
      %s52 = sphi 0, %s51
      %s66 = sphi 0, %s52
      %s70 = sphi 0, %s70
      %s72 = sphi 0, %s70
      %s73 = sphi 0, %s72
      %s87 = sphi 0, %s73
      %s93 = sphi 0, %s95
      %s96 = sphi 0, %s93
      %s97 = sphi 0, %s96
      %s113 = sphi 0, %s97
      %s119 = sphi 0, %s121
      %s122 = sphi 0, %s119
      %s123 = sphi 0, %s122
      %s139 = sphi 0, %s123
      %s145 = sphi 0, %s147
      %s148 = sphi 0, %s145
      %s149 = sphi 0, %s148
      %s165 = sphi 0, %s149
      %s171 = sphi 0, %s173
      %s174 = sphi 0, %s171
      %s175 = sphi 0, %s174
      %s191 = sphi 0, %s175
      %s197 = sphi 0, %s199
      %s200 = sphi 0, %s197
      %s201 = sphi 0, %s200
      %s217 = sphi 0, %s201
    $region4: #{tpu_custom_call.1} parent=1 // loop_header_branch
      %23 = sbr.rel (%p21) target = $region8
    $region5: #{tpu_custom_call.1} parent=1 // loop_body
      %s25 = ssub.s32 %s20, 1
      %s26 = ssub.s32 %s20, 2
      %s27 = sadd.s32 %s20, 1
      %s29 = sadd.s32 %s28, 1
      %p32 = scmp.eq.s32.totalorder %s20, 1
      %p33 = scmp.ne.s32.totalorder %s28, %s30
      %p34 = scmp.eq.s32.totalorder %s20, 0
      %p35 = por %p33, %p34
      %p36 = scmp.ne.s32.totalorder %s28, %s30
      %p37 = scmp.eq.s32.totalorder %s25, 1
      %p38 = por %p36, %p37
      %p39 = scmp.ne.s32.totalorder %s30, %s31
      %p40 = scmp.eq.s32.totalorder %s25, 0
      %p41 = por %p39, %p40
      %p42 = scmp.ne.s32.totalorder %s30, %s31
      %p43 = scmp.eq.s32.totalorder %s26, 1
      %p44 = por %p42, %p43
      %p46 = scmp.ne.s32.totalorder %s31, %s45
      %p47 = scmp.eq.s32.totalorder %s26, 0
      %p48 = por %p46, %p47
      %s50 = sadd.s32 %s49, 1
      %p53 = scmp.eq.s32.totalorder %s20, 1
      %p54 = scmp.ne.s32.totalorder %s49, %s51
      %p55 = scmp.eq.s32.totalorder %s20, 0
      %p56 = por %p54, %p55
      %p57 = scmp.ne.s32.totalorder %s49, %s51
      %p58 = scmp.eq.s32.totalorder %s25, 1
      %p59 = por %p57, %p58
      %p60 = scmp.ne.s32.totalorder %s51, %s52
      %p61 = scmp.eq.s32.totalorder %s25, 0
      %p62 = por %p60, %p61
      %p63 = scmp.ne.s32.totalorder %s51, %s52
      %p64 = scmp.eq.s32.totalorder %s26, 1
      %p65 = por %p63, %p64
      %p67 = scmp.ne.s32.totalorder %s52, %s66
      %p68 = scmp.eq.s32.totalorder %s26, 0
      %p69 = por %p67, %p68
      %s71 = sadd.s32 %s70, 1
      %p74 = scmp.eq.s32.totalorder %s20, 1
      %p75 = scmp.ne.s32.totalorder %s70, %s72
      %p76 = scmp.eq.s32.totalorder %s20, 0
      %p77 = por %p75, %p76
      %p78 = scmp.ne.s32.totalorder %s70, %s72
      %p79 = scmp.eq.s32.totalorder %s25, 1
      %p80 = por %p78, %p79
      %p81 = scmp.ne.s32.totalorder %s72, %s73
      %p82 = scmp.eq.s32.totalorder %s25, 0
      %p83 = por %p81, %p82
      %p84 = scmp.ne.s32.totalorder %s72, %s73
      %p85 = scmp.eq.s32.totalorder %s26, 1
      %p86 = por %p84, %p85
      %p88 = scmp.ne.s32.totalorder %s73, %s87
      %p89 = scmp.eq.s32.totalorder %s26, 0
      %p90 = por %p88, %p89
      %s91 = ssub.s32 %s20, %s27
      %p92 = scmp.eq.s32.totalorder %s91, 0
      %s94 = sadd.s32 %s93, 1
      %s95 = scalar_select %p92, %s93, %s94
      %p98 = pneg %p92
      %p99 = scmp.eq.s32.totalorder %s20, 1
      %p100 = por %p98, %p99
      %p101 = scmp.ne.s32.totalorder %s93, %s96
      %p102 = scmp.eq.s32.totalorder %s20, 0
      %p103 = por %p101, %p102
      %p104 = scmp.ne.s32.totalorder %s93, %s96
      %p105 = scmp.eq.s32.totalorder %s25, 1
      %p106 = por %p104, %p105
      %p107 = scmp.ne.s32.totalorder %s96, %s97
      %p108 = scmp.eq.s32.totalorder %s25, 0
      %p109 = por %p107, %p108
      %p110 = scmp.ne.s32.totalorder %s96, %s97
      %p111 = scmp.eq.s32.totalorder %s26, 1
      %p112 = por %p110, %p111
      %p114 = scmp.ne.s32.totalorder %s97, %s113
      %p115 = scmp.eq.s32.totalorder %s26, 0
      %p116 = por %p114, %p115
      %s117 = ssub.s32 %s20, %s27
      %p118 = scmp.eq.s32.totalorder %s117, 0
      %s120 = sadd.s32 %s119, 1
      %s121 = scalar_select %p118, %s119, %s120
      %p124 = pneg %p118
      %p125 = scmp.eq.s32.totalorder %s20, 1
      %p126 = por %p124, %p125
      %p127 = scmp.ne.s32.totalorder %s119, %s122
      %p128 = scmp.eq.s32.totalorder %s20, 0
      %p129 = por %p127, %p128
      %p130 = scmp.ne.s32.totalorder %s119, %s122
      %p131 = scmp.eq.s32.totalorder %s25, 1
      %p132 = por %p130, %p131
      %p133 = scmp.ne.s32.totalorder %s122, %s123
      %p134 = scmp.eq.s32.totalorder %s25, 0
      %p135 = por %p133, %p134
      %p136 = scmp.ne.s32.totalorder %s122, %s123
      %p137 = scmp.eq.s32.totalorder %s26, 1
      %p138 = por %p136, %p137
      %p140 = scmp.ne.s32.totalorder %s123, %s139
      %p141 = scmp.eq.s32.totalorder %s26, 0
      %p142 = por %p140, %p141
      %s143 = ssub.s32 %s20, %s27
      %p144 = scmp.eq.s32.totalorder %s143, 0
      %s146 = sadd.s32 %s145, 1
      %s147 = scalar_select %p144, %s145, %s146
      %p150 = pneg %p144
      %p151 = scmp.eq.s32.totalorder %s20, 1
      %p152 = por %p150, %p151
      %p153 = scmp.ne.s32.totalorder %s145, %s148
      %p154 = scmp.eq.s32.totalorder %s20, 0
      %p155 = por %p153, %p154
      %p156 = scmp.ne.s32.totalorder %s145, %s148
      %p157 = scmp.eq.s32.totalorder %s25, 1
      %p158 = por %p156, %p157
      %p159 = scmp.ne.s32.totalorder %s148, %s149
      %p160 = scmp.eq.s32.totalorder %s25, 0
      %p161 = por %p159, %p160
      %p162 = scmp.ne.s32.totalorder %s148, %s149
      %p163 = scmp.eq.s32.totalorder %s26, 1
      %p164 = por %p162, %p163
      %p166 = scmp.ne.s32.totalorder %s149, %s165
      %p167 = scmp.eq.s32.totalorder %s26, 0
      %p168 = por %p166, %p167
      %s169 = ssub.s32 %s20, %s27
      %p170 = scmp.eq.s32.totalorder %s169, 0
      %s172 = sadd.s32 %s171, 1
      %s173 = scalar_select %p170, %s171, %s172
      %p176 = pneg %p170
      %p177 = scmp.eq.s32.totalorder %s20, 1
      %p178 = por %p176, %p177
      %p179 = scmp.ne.s32.totalorder %s171, %s174
      %p180 = scmp.eq.s32.totalorder %s20, 0
      %p181 = por %p179, %p180
      %p182 = scmp.ne.s32.totalorder %s171, %s174
      %p183 = scmp.eq.s32.totalorder %s25, 1
      %p184 = por %p182, %p183
      %p185 = scmp.ne.s32.totalorder %s174, %s175
      %p186 = scmp.eq.s32.totalorder %s25, 0
      %p187 = por %p185, %p186
      %p188 = scmp.ne.s32.totalorder %s174, %s175
      %p189 = scmp.eq.s32.totalorder %s26, 1
      %p190 = por %p188, %p189
      %p192 = scmp.ne.s32.totalorder %s175, %s191
      %p193 = scmp.eq.s32.totalorder %s26, 0
      %p194 = por %p192, %p193
      %s195 = ssub.s32 %s20, %s27
      %p196 = scmp.eq.s32.totalorder %s195, 0
      %s198 = sadd.s32 %s197, 1
      %s199 = scalar_select %p196, %s197, %s198
      %p202 = pneg %p196
      %p203 = scmp.eq.s32.totalorder %s20, 1
      %p204 = por %p202, %p203
      %p205 = scmp.ne.s32.totalorder %s197, %s200
      %p206 = scmp.eq.s32.totalorder %s20, 0
      %p207 = por %p205, %p206
      %p208 = scmp.ne.s32.totalorder %s197, %s200
      %p209 = scmp.eq.s32.totalorder %s25, 1
      %p210 = por %p208, %p209
      %p211 = scmp.ne.s32.totalorder %s200, %s201
      %p212 = scmp.eq.s32.totalorder %s25, 0
      %p213 = por %p211, %p212
      %p214 = scmp.ne.s32.totalorder %s200, %s201
      %p215 = scmp.eq.s32.totalorder %s26, 1
      %p216 = por %p214, %p215
      %p218 = scmp.ne.s32.totalorder %s201, %s217
      %p219 = scmp.eq.s32.totalorder %s26, 0
      %p220 = por %p218, %p219
      %p221 = scmp.le.s32.totalorder 1, %s20
      %p222 = scmp.lt.s32.totalorder %s20, 3
      %p223 = pnand %p221, %p222
      %p224 = pneg %p223
      // Predicated region
      $region9: #{tpu_custom_call.1} parent=5 // pred_check
        _
      $region10: #{tpu_custom_call.1} parent=5 // pred_check_branch
        %226 = sbr.rel (%p223) target = $region12
      $region11: #{tpu_custom_call.1} parent=5 // pred_region
        %s227 = ssub.s32 %s20, 1
        // Predicated region
        $region13: #{tpu_custom_call.1} parent=11 // pred_check
          %p228 = pneg %p41
        $region14: #{tpu_custom_call.1} parent=11 // pred_check_branch
          %230 = sbr.rel (%p228) target = $region16
        $region15: #{tpu_custom_call.1} parent=11 // pred_region
          _
        $region16: #{tpu_custom_call.1} parent=11 // pred_fallthru
          _
        // Predicated region
        $region17: #{tpu_custom_call.1} parent=11 // pred_check
          %p231 = pneg %p62
        $region18: #{tpu_custom_call.1} parent=11 // pred_check_branch
          %233 = sbr.rel (%p231) target = $region20
        $region19: #{tpu_custom_call.1} parent=11 // pred_region
          _
        $region20: #{tpu_custom_call.1} parent=11 // pred_fallthru
          _
        // Predicated region
        $region21: #{tpu_custom_call.1} parent=11 // pred_check
          %p234 = pneg %p83
        $region22: #{tpu_custom_call.1} parent=11 // pred_check_branch
          %236 = sbr.rel (%p234) target = $region24
        $region23: #{tpu_custom_call.1} parent=11 // pred_region
          _
        $region24: #{tpu_custom_call.1} parent=11 // pred_fallthru
          _
      $region12: #{tpu_custom_call.1} parent=5 // pred_fallthru
        _
      %p237 = scmp.lt.s32.totalorder %s20, 2
      // Predicated region
      $region25: #{tpu_custom_call.1} parent=5 // pred_check
        %p238 = pneg %p237
      $region26: #{tpu_custom_call.1} parent=5 // pred_check_branch
        %240 = sbr.rel (%p238) target = $region28
      $region27: #{tpu_custom_call.1} parent=5 // pred_region
        // Predicated region
        $region29: #{tpu_custom_call.1} parent=27 // pred_check
          %p241 = pneg %p103
        $region30: #{tpu_custom_call.1} parent=27 // pred_check_branch
          %243 = sbr.rel (%p241) target = $region32
        $region31: #{tpu_custom_call.1} parent=27 // pred_region
          %p244 = scmp.lt.s32.totalorder %s20, 1
          %s245 = scalar_select %p244, %s20, 1
          %s246 = smul.addr %s245, 4
          %s247 = scalar_lea.vmem %s3, %s246
        $region32: #{tpu_custom_call.1} parent=27 // pred_fallthru
          _
        // Predicated region
        $region33: #{tpu_custom_call.1} parent=27 // pred_check
          %p248 = pneg %p129
        $region34: #{tpu_custom_call.1} parent=27 // pred_check_branch
          %250 = sbr.rel (%p248) target = $region36
        $region35: #{tpu_custom_call.1} parent=27 // pred_region
          %p251 = scmp.lt.s32.totalorder %s20, 1
          %s252 = scalar_select %p251, %s20, 1
          %s253 = smul.addr %s252, 4
          %s254 = smul.addr %s253, 8
          %s255 = scalar_lea.vmem %s4, %s254
        $region36: #{tpu_custom_call.1} parent=27 // pred_fallthru
          _
        // Predicated region
        $region37: #{tpu_custom_call.1} parent=27 // pred_check
          %p256 = pneg %p155
        $region38: #{tpu_custom_call.1} parent=27 // pred_check_branch
          %258 = sbr.rel (%p256) target = $region40
        $region39: #{tpu_custom_call.1} parent=27 // pred_region
          %p259 = scmp.lt.s32.totalorder %s20, 1
          %s260 = scalar_select %p259, %s20, 1
          %s261 = smul.addr %s260, 4
          %s262 = smul.addr %s261, 8
          %s263 = scalar_lea.vmem %s5, %s262
        $region40: #{tpu_custom_call.1} parent=27 // pred_fallthru
          _
      $region28: #{tpu_custom_call.1} parent=5 // pred_fallthru
        _
      %p264 = scmp.le.s32.totalorder 1, %s20
      %p265 = scmp.lt.s32.totalorder %s20, 3
      %p266 = pnand %p264, %p265
      %p267 = pneg %p266
      // Predicated region
      $region41: #{tpu_custom_call.1} parent=5 // pred_check
        _
      $region42: #{tpu_custom_call.1} parent=5 // pred_check_branch
        %269 = sbr.rel (%p266) target = $region44
      $region43: #{tpu_custom_call.1} parent=5 // pred_region
        %s270 = ssub.s32 %s20, 1
        %p271 = pneg %p41
        %p272 = pneg %p38
        %p273 = pneg %p62
        %p274 = pneg %p59
        %p275 = pneg %p83
        %p276 = pneg %p80
        %p277 = scmp.lt.s32.totalorder %s25, 1
        %s278 = scalar_select %p277, %s25, 1
        %s279 = smul.addr %s278, 4
        %s280 = scalar_lea.vmem %s3, %s279
        %p281 = pneg %p109
        %p282 = pneg %p106
        %p283 = scmp.lt.s32.totalorder %s25, 1
        %s284 = scalar_select %p283, %s25, 1
        %s285 = smul.addr %s284, 4
        %s286 = smul.addr %s285, 8
        %s287 = scalar_lea.vmem %s4, %s286
        %p288 = pneg %p135
        %p289 = pneg %p132
        %p290 = scmp.lt.s32.totalorder %s25, 1
        %s291 = scalar_select %p290, %s25, 1
        %s292 = smul.addr %s291, 4
        %s293 = smul.addr %s292, 8
        %s294 = scalar_lea.vmem %s5, %s293
        %p295 = pneg %p161
        %p296 = pneg %p158
        %p297 = pneg %p187
        %p298 = pneg %p184
        %s299 = sand.u32 %s174, 1
        %s300 = scalar_lea.sflag [#allocation3], %s299
        %s301 = sand.u32 %s174, 1
        %s302 = smul.addr %s301, 32
        %s303 = scalar_lea.vmem [#allocation2], %s302
        %p304 = pneg %p213
        %p305 = pneg %p210
        %s306 = sand.u32 %s200, 1
        %s307 = scalar_lea.sflag [#allocation5], %s306
        %s308 = sand.u32 %s200, 1
        %s309 = smul.addr %s308, 32
        %s310 = scalar_lea.vmem [#allocation4], %s309
        %p311 = scmp.lt.s32.totalorder %s25, 1
        %s312 = scalar_select %p311, %s25, 1
        %s313 = smul.addr %s312, 4
        %s314 = scalar_lea.vmem %s3, %s313
        %p315 = scmp.lt.s32.totalorder %s25, 1
        %s316 = scalar_select %p315, %s25, 1
        %s317 = smul.addr %s316, 4
        %s318 = smul.addr %s317, 8
        %s319 = scalar_lea.vmem %s4, %s318
        %p320 = scmp.lt.s32.totalorder %s25, 1
        %s321 = scalar_select %p320, %s25, 1
        %s322 = smul.addr %s321, 4
        %s323 = smul.addr %s322, 8
        %s324 = scalar_lea.vmem %s5, %s323
        %v326 = vld [vmem:[%s2] sm:$0xff]
        %v327 = vld [vmem:[%s2 + $0x8] sm:$0xff]
        %v328 = vld [vmem:[%s2 + $0x10] sm:$0xff]
        %v329 = vld [vmem:[%s2 + $0x18] sm:$0xff]
        %v330 = vld [vmem:[%s2 + $0x20] sm:$0xff]
        %v331 = vld [vmem:[%s2 + $0x28] sm:$0xff]
        %v332 = vld [vmem:[%s2 + $0x30] sm:$0xff]
        %v333 = vld [vmem:[%s2 + $0x38] sm:$0xff]
        %v334 = vld [vmem:[%s2 + $0x40] sm:$0xff]
        %v335 = vld [vmem:[%s2 + $0x48] sm:$0xff]
        %v336 = vld [vmem:[%s2 + $0x50] sm:$0xff]
        %v337 = vld [vmem:[%s2 + $0x58] sm:$0xff]
        %v338 = vld [vmem:[%s2 + $0x60] sm:$0xff]
        %v339 = vld [vmem:[%s2 + $0x68] sm:$0xff]
        %v340 = vld [vmem:[%s2 + $0x70] sm:$0xff]
        %v341 = vld [vmem:[%s2 + $0x78] sm:$0xff]
        %343 = vset.pattern.permute.xlu0 0
        %344 = vperm.xlu0 %343, %v326
        %v345 = vpop.permute.xlu0 %344
        %348 = vset.pattern.permute.xlu0 0
        %349 = vperm.xlu0 %348, %v327
        %v350 = vpop.permute.xlu0 %349
        %353 = vset.pattern.permute.xlu0 0
        %354 = vperm.xlu0 %353, %v328
        %v355 = vpop.permute.xlu0 %354
        %358 = vset.pattern.permute.xlu0 0
        %359 = vperm.xlu0 %358, %v329
        %v360 = vpop.permute.xlu0 %359
        %363 = vset.pattern.permute.xlu0 0
        %364 = vperm.xlu0 %363, %v330
        %v365 = vpop.permute.xlu0 %364
        %368 = vset.pattern.permute.xlu0 0
        %369 = vperm.xlu0 %368, %v331
        %v370 = vpop.permute.xlu0 %369
        %373 = vset.pattern.permute.xlu0 0
        %374 = vperm.xlu0 %373, %v332
        %v375 = vpop.permute.xlu0 %374
        %378 = vset.pattern.permute.xlu0 0
        %379 = vperm.xlu0 %378, %v333
        %v380 = vpop.permute.xlu0 %379
        %383 = vset.pattern.permute.xlu0 0
        %384 = vperm.xlu0 %383, %v334
        %v385 = vpop.permute.xlu0 %384
        %388 = vset.pattern.permute.xlu0 0
        %389 = vperm.xlu0 %388, %v335
        %v390 = vpop.permute.xlu0 %389
        %393 = vset.pattern.permute.xlu0 0
        %394 = vperm.xlu0 %393, %v336
        %v395 = vpop.permute.xlu0 %394
        %398 = vset.pattern.permute.xlu0 0
        %399 = vperm.xlu0 %398, %v337
        %v400 = vpop.permute.xlu0 %399
        %403 = vset.pattern.permute.xlu0 0
        %404 = vperm.xlu0 %403, %v338
        %v405 = vpop.permute.xlu0 %404
        %408 = vset.pattern.permute.xlu0 0
        %409 = vperm.xlu0 %408, %v339
        %v410 = vpop.permute.xlu0 %409
        %413 = vset.pattern.permute.xlu0 0
        %414 = vperm.xlu0 %413, %v340
        %v415 = vpop.permute.xlu0 %414
        %418 = vset.pattern.permute.xlu0 0
        %419 = vperm.xlu0 %418, %v341
        %v420 = vpop.permute.xlu0 %419
        %v422 = vld [vmem:[%s314] sm:$0xf]
        %v423 = vld [vmem:[%s319] sm:$0xff]
        %v424 = vld [vmem:[%s319 + $0x8] sm:$0xff]
        %v425 = vld [vmem:[%s319 + $0x10] sm:$0xff]
        %v426 = vld [vmem:[%s319 + $0x18] sm:$0xff]
        %427 = vrot.lane.b32.xlu0 %v422, 1
        %v428 = vpop.permute.xlu0 %427
        %v429 = vlaneseq
        %v430 = vand.u32 %v429, 127
        %v431 = vadd.s32 %v430, 4294967295
        %vm432 = vcmp.ge.s32.totalorder %v431, 0
        %vm433 = vcmp.lt.s32.totalorder %v431, 128
        %vm434 = vmand %vm432, %vm433
        %v435 = vsel %vm434, %v428, 0.0
        %v436 = vpack.c.bf16 %v435, %v435
        %437 = vrot.lane.b32.xlu0 %v423, 1
        %v438 = vpop.permute.xlu0 %437
        %439 = vrot.lane.b32.xlu0 %v424, 1
        %v440 = vpop.permute.xlu0 %439
        %441 = vrot.lane.b32.xlu0 %v425, 1
        %v442 = vpop.permute.xlu0 %441
        %443 = vrot.lane.b32.xlu0 %v426, 1
        %v444 = vpop.permute.xlu0 %443
        %v445 = vsel %vm434, %v438, 0.0
        %v446 = vsel %vm434, %v440, 0.0
        %v447 = vsel %vm434, %v442, 0.0
        %v448 = vsel %vm434, %v444, 0.0
        %v449 = vpack.c.bf16 %v446, %v445
        %v450 = vpack.c.bf16 %v448, %v447
        %v451 = vld [vmem:[%s0] sm:$0xf]
        %v452 = vld [vmem:[%s0 + $0x4] sm:$0xf]
        %v453 = vld [vmem:[%s0 + $0x8] sm:$0xf]
        %v454 = vld [vmem:[%s0 + $0xc] sm:$0xf]
        %v455 = vld [vmem:[%s0 + $0x10] sm:$0xf]
        %v456 = vld [vmem:[%s0 + $0x14] sm:$0xf]
        %v457 = vld [vmem:[%s0 + $0x18] sm:$0xf]
        %v458 = vld [vmem:[%s0 + $0x1c] sm:$0xf]
        %v459 = vld [vmem:[%s0 + $0x20] sm:$0xf]
        %v460 = vld [vmem:[%s0 + $0x24] sm:$0xf]
        %v461 = vld [vmem:[%s0 + $0x28] sm:$0xf]
        %v462 = vld [vmem:[%s0 + $0x2c] sm:$0xf]
        %v463 = vld [vmem:[%s0 + $0x30] sm:$0xf]
        %v464 = vld [vmem:[%s0 + $0x34] sm:$0xf]
        %v465 = vld [vmem:[%s0 + $0x38] sm:$0xf]
        %v466 = vld [vmem:[%s0 + $0x3c] sm:$0xf]
        %v483 = vunpack.c.l.b16 %v451
        %v484 = vunpack.c.l.b16 %v452
        %v485 = vunpack.c.l.b16 %v453
        %v486 = vunpack.c.l.b16 %v454
        %v487 = vunpack.c.l.b16 %v455
        %v488 = vunpack.c.l.b16 %v456
        %v489 = vunpack.c.l.b16 %v457
        %v490 = vunpack.c.l.b16 %v458
        %v491 = vunpack.c.l.b16 %v459
        %v492 = vunpack.c.l.b16 %v460
        %v493 = vunpack.c.l.b16 %v461
        %v494 = vunpack.c.l.b16 %v462
        %v495 = vunpack.c.l.b16 %v463
        %v496 = vunpack.c.l.b16 %v464
        %v497 = vunpack.c.l.b16 %v465
        %v498 = vunpack.c.l.b16 %v466
        %v499 = vpack.c.b16 %v484, %v483
        %v500 = vpack.c.b16 %v486, %v485
        %v501 = vpack.c.b16 %v488, %v487
        %v502 = vpack.c.b16 %v490, %v489
        %v503 = vpack.c.b16 %v492, %v491
        %v504 = vpack.c.b16 %v494, %v493
        %v505 = vpack.c.b16 %v496, %v495
        %v506 = vpack.c.b16 %v498, %v497
        %vm507 = vcmask 31744
        %v509 = vsel %vm507, %v499, 0
        %v512 = vsel %vm507, %v500, 0
        %v515 = vsel %vm507, %v501, 0
        %v518 = vsel %vm507, %v502, 0
        %v521 = vsel %vm507, %v503, 0
        %v524 = vsel %vm507, %v504, 0
        %v527 = vsel %vm507, %v505, 0
        %v530 = vsel %vm507, %v506, 0
        %vm532 = vcmask 1041408
        %v534 = vsel %vm532, %v436, 0
        %536 = vmatprep.subr.bf16.mxu0 0
        %537 = vmatpush1.bf16.msra.mxu0 %v534
        %538 = vmatprep.subr.bf16.mxu0 0
        %539 = vmatpush1.bf16.msra.mxu0 0
        %540 = vmatprep.subr.bf16.mxu0 0
        %541 = vmatpush1.bf16.msra.mxu0 0
        %542 = vmatprep.subr.bf16.mxu0 0
        %543 = vmatpush1.bf16.msra.mxu0 0
        %544 = vmatprep.subr.bf16.mxu0 0
        %545 = vmatpush1.bf16.msra.mxu0 0
        %546 = vmatprep.subr.bf16.mxu0 0
        %547 = vmatpush1.bf16.msra.mxu0 0
        %548 = vmatprep.subr.bf16.mxu0 0
        %549 = vmatpush1.bf16.msra.mxu0 0
        %550 = vmatprep.subr.bf16.mxu0 0
        %551 = vmatpush1.bf16.msra.mxu0 0
        %552 = vmatprep.subr.bf16.mxu0 0
        %553 = vmatpush1.bf16.msra.mxu0 0
        %554 = vmatprep.subr.bf16.mxu0 0
        %555 = vmatpush1.bf16.msra.mxu0 0
        %556 = vmatprep.subr.bf16.mxu0 0
        %557 = vmatpush1.bf16.msra.mxu0 0
        %558 = vmatprep.subr.bf16.mxu0 0
        %559 = vmatpush1.bf16.msra.mxu0 0
        %560 = vmatprep.subr.bf16.mxu0 0
        %561 = vmatpush1.bf16.msra.mxu0 0
        %562 = vmatprep.subr.bf16.mxu0 0
        %563 = vmatpush1.bf16.msra.mxu0 0
        %564 = vmatprep.subr.bf16.mxu0 0
        %565 = vmatpush1.bf16.msra.mxu0 0
        %566 = vmatprep.subr.bf16.mxu0 0
        %567 = vmatpush1.bf16.msra.mxu0 0
        %568 = vmatprep.mubr.bf16.mxu0 0
        %569 = vmatmul.mubr.bf16.gmra.mrb[0].mxu0 %v509
        %v570 = vpop.f32.mrb[0].mxu0
        %v571 = vadd.f32 0.0, %v570
        %v572 = vpop.f32.mrb[0].mxu0
        %v573 = vpop.f32.mrb[0].mxu0
        %v574 = vadd.f32 0.0, %v573
        %v575 = vpop.f32.mrb[0].mxu0
        %576 = vmatprep.mubr.bf16.mxu0 0
        %577 = vmatmul.mubr.bf16.gmra.mrb[0].mxu0 %v512
        %v578 = vpop.f32.mrb[0].mxu0
        %v579 = vadd.f32 0.0, %v578
        %v580 = vpop.f32.mrb[0].mxu0
        %v581 = vpop.f32.mrb[0].mxu0
        %v582 = vadd.f32 0.0, %v581
        %v583 = vpop.f32.mrb[0].mxu0
        %584 = vmatprep.mubr.bf16.mxu0 0
        %585 = vmatmul.mubr.bf16.gmra.mrb[0].mxu0 %v515
        %v586 = vpop.f32.mrb[0].mxu0
        %v587 = vadd.f32 0.0, %v586
        %v588 = vpop.f32.mrb[0].mxu0
        %v589 = vpop.f32.mrb[0].mxu0
        %v590 = vadd.f32 0.0, %v589
        %v591 = vpop.f32.mrb[0].mxu0
        %592 = vmatprep.mubr.bf16.mxu0 0
        %593 = vmatmul.mubr.bf16.gmra.mrb[0].mxu0 %v518
        %v594 = vpop.f32.mrb[0].mxu0
        %v595 = vadd.f32 0.0, %v594
        %v596 = vpop.f32.mrb[0].mxu0
        %v597 = vpop.f32.mrb[0].mxu0
        %v598 = vadd.f32 0.0, %v597
        %v599 = vpop.f32.mrb[0].mxu0
        %600 = vmatprep.mubr.bf16.mxu0 0
        %601 = vmatmul.mubr.bf16.gmra.mrb[0].mxu0 %v521
        %v602 = vpop.f32.mrb[0].mxu0
        %v603 = vadd.f32 0.0, %v602
        %v604 = vpop.f32.mrb[0].mxu0
        %v605 = vpop.f32.mrb[0].mxu0
        %v606 = vadd.f32 0.0, %v605
        %v607 = vpop.f32.mrb[0].mxu0
        %608 = vmatprep.mubr.bf16.mxu0 0
        %609 = vmatmul.mubr.bf16.gmra.mrb[0].mxu0 %v524
        %v610 = vpop.f32.mrb[0].mxu0
        %v611 = vadd.f32 0.0, %v610
        %v612 = vpop.f32.mrb[0].mxu0
        %v613 = vpop.f32.mrb[0].mxu0
        %v614 = vadd.f32 0.0, %v613
        %v615 = vpop.f32.mrb[0].mxu0
        %616 = vmatprep.mubr.bf16.mxu0 0
        %617 = vmatmul.mubr.bf16.gmra.mrb[0].mxu0 %v527
        %v618 = vpop.f32.mrb[0].mxu0
        %v619 = vadd.f32 0.0, %v618
        %v620 = vpop.f32.mrb[0].mxu0
        %v621 = vpop.f32.mrb[0].mxu0
        %v622 = vadd.f32 0.0, %v621
        %v623 = vpop.f32.mrb[0].mxu0
        %624 = vmatprep.mubr.bf16.mxu0 0
        %625 = vmatmul.mubr.bf16.gmra.mrb[0].mxu0 %v530
        %v626 = vpop.f32.mrb[0].mxu0
        %v627 = vadd.f32 0.0, %v626
        %v628 = vpop.f32.mrb[0].mxu0
        %v629 = vpop.f32.mrb[0].mxu0
        %v630 = vadd.f32 0.0, %v629
        %v631 = vpop.f32.mrb[0].mxu0
        %632 = vdwg.mxu0
        %v633 = vadd.f32 %v345, %v571
        %v634 = vadd.f32 %v350, %v574
        %v635 = vadd.f32 %v355, %v579
        %v636 = vadd.f32 %v360, %v582
        %v637 = vadd.f32 %v365, %v587
        %v638 = vadd.f32 %v370, %v590
        %v639 = vadd.f32 %v375, %v595
        %v640 = vadd.f32 %v380, %v598
        %v641 = vadd.f32 %v385, %v603
        %v642 = vadd.f32 %v390, %v606
        %v643 = vadd.f32 %v395, %v611
        %v644 = vadd.f32 %v400, %v614
        %v645 = vadd.f32 %v405, %v619
        %v646 = vadd.f32 %v410, %v622
        %v647 = vadd.f32 %v415, %v627
        %v648 = vadd.f32 %v420, %v630
        %v649 = vld [vmem:[%s1] sm:$0xf]
        %v650 = vld [vmem:[%s1 + $0x4] sm:$0xf]
        %v651 = vld [vmem:[%s1 + $0x8] sm:$0xf]
        %v652 = vld [vmem:[%s1 + $0xc] sm:$0xf]
        %v653 = vld [vmem:[%s1 + $0x10] sm:$0xf]
        %v654 = vld [vmem:[%s1 + $0x14] sm:$0xf]
        %v655 = vld [vmem:[%s1 + $0x18] sm:$0xf]
        %v656 = vld [vmem:[%s1 + $0x1c] sm:$0xf]
        %v657 = vld [vmem:[%s1 + $0x20] sm:$0xf]
        %v658 = vld [vmem:[%s1 + $0x24] sm:$0xf]
        %v659 = vld [vmem:[%s1 + $0x28] sm:$0xf]
        %v660 = vld [vmem:[%s1 + $0x2c] sm:$0xf]
        %v661 = vld [vmem:[%s1 + $0x30] sm:$0xf]
        %v662 = vld [vmem:[%s1 + $0x34] sm:$0xf]
        %v663 = vld [vmem:[%s1 + $0x38] sm:$0xf]
        %v664 = vld [vmem:[%s1 + $0x3c] sm:$0xf]
        %v681 = vunpack.c.l.b16 %v649
        %v682 = vunpack.c.l.b16 %v650
        %v683 = vunpack.c.l.b16 %v651
        %v684 = vunpack.c.l.b16 %v652
        %v685 = vunpack.c.l.b16 %v653
        %v686 = vunpack.c.l.b16 %v654
        %v687 = vunpack.c.l.b16 %v655
        %v688 = vunpack.c.l.b16 %v656
        %v689 = vunpack.c.l.b16 %v657
        %v690 = vunpack.c.l.b16 %v658
        %v691 = vunpack.c.l.b16 %v659
        %v692 = vunpack.c.l.b16 %v660
        %v693 = vunpack.c.l.b16 %v661
        %v694 = vunpack.c.l.b16 %v662
        %v695 = vunpack.c.l.b16 %v663
        %v696 = vunpack.c.l.b16 %v664
        %v697 = vpack.c.b16 %v682, %v681
        %v698 = vpack.c.b16 %v684, %v683
        %v699 = vpack.c.b16 %v686, %v685
        %v700 = vpack.c.b16 %v688, %v687
        %v701 = vpack.c.b16 %v690, %v689
        %v702 = vpack.c.b16 %v692, %v691
        %v703 = vpack.c.b16 %v694, %v693
        %v704 = vpack.c.b16 %v696, %v695
        %vm705 = vcmask 261120
        %v707 = vsel %vm705, %v697, 0
        %v710 = vsel %vm705, %v698, 0
        %v713 = vsel %vm705, %v699, 0
        %v716 = vsel %vm705, %v700, 0
        %v719 = vsel %vm705, %v701, 0
        %v722 = vsel %vm705, %v702, 0
        %v725 = vsel %vm705, %v703, 0
        %v728 = vsel %vm705, %v704, 0
        %730 = vmatprep.subr.bf16.mxu0 0
        %731 = vmatpush1.bf16.msra.mxu0 %v449
        %732 = vmatprep.subr.bf16.mxu0 0
        %733 = vmatpush1.bf16.msra.mxu0 %v450
        %734 = vmatprep.subr.bf16.mxu0 0
        %735 = vmatpush1.bf16.msra.mxu0 0
        %736 = vmatprep.subr.bf16.mxu0 0
        %737 = vmatpush1.bf16.msra.mxu0 0
        %738 = vmatprep.subr.bf16.mxu0 0
        %739 = vmatpush1.bf16.msra.mxu0 0
        %740 = vmatprep.subr.bf16.mxu0 0
        %741 = vmatpush1.bf16.msra.mxu0 0
        %742 = vmatprep.subr.bf16.mxu0 0
        %743 = vmatpush1.bf16.msra.mxu0 0
        %744 = vmatprep.subr.bf16.mxu0 0
        %745 = vmatpush1.bf16.msra.mxu0 0
        %746 = vmatprep.subr.bf16.mxu0 0
        %747 = vmatpush1.bf16.msra.mxu0 0
        %748 = vmatprep.subr.bf16.mxu0 0
        %749 = vmatpush1.bf16.msra.mxu0 0
        %750 = vmatprep.subr.bf16.mxu0 0
        %751 = vmatpush1.bf16.msra.mxu0 0
        %752 = vmatprep.subr.bf16.mxu0 0
        %753 = vmatpush1.bf16.msra.mxu0 0
        %754 = vmatprep.subr.bf16.mxu0 0
        %755 = vmatpush1.bf16.msra.mxu0 0
        %756 = vmatprep.subr.bf16.mxu0 0
        %757 = vmatpush1.bf16.msra.mxu0 0
        %758 = vmatprep.subr.bf16.mxu0 0
        %759 = vmatpush1.bf16.msra.mxu0 0
        %760 = vmatprep.subr.bf16.mxu0 0
        %761 = vmatpush1.bf16.msra.mxu0 0
        %762 = vmatprep.mubr.bf16.mxu0 0
        %763 = vmatmul.mubr.bf16.gmra.mrb[0].mxu0 %v707
        %v764 = vpop.f32.mrb[0].mxu0
        %v765 = vadd.f32 0.0, %v764
        %v766 = vpop.f32.mrb[0].mxu0
        %v767 = vpop.f32.mrb[0].mxu0
        %v768 = vadd.f32 0.0, %v767
        %v769 = vpop.f32.mrb[0].mxu0
        %770 = vmatprep.mubr.bf16.mxu0 0
        %771 = vmatmul.mubr.bf16.gmra.mrb[0].mxu0 %v710
        %v772 = vpop.f32.mrb[0].mxu0
        %v773 = vadd.f32 0.0, %v772
        %v774 = vpop.f32.mrb[0].mxu0
        %v775 = vpop.f32.mrb[0].mxu0
        %v776 = vadd.f32 0.0, %v775
        %v777 = vpop.f32.mrb[0].mxu0
        %778 = vmatprep.mubr.bf16.mxu0 0
        %779 = vmatmul.mubr.bf16.gmra.mrb[0].mxu0 %v713
        %v780 = vpop.f32.mrb[0].mxu0
        %v781 = vadd.f32 0.0, %v780
        %v782 = vpop.f32.mrb[0].mxu0
        %v783 = vpop.f32.mrb[0].mxu0
        %v784 = vadd.f32 0.0, %v783
        %v785 = vpop.f32.mrb[0].mxu0
        %786 = vmatprep.mubr.bf16.mxu0 0
        %787 = vmatmul.mubr.bf16.gmra.mrb[0].mxu0 %v716
        %v788 = vpop.f32.mrb[0].mxu0
        %v789 = vadd.f32 0.0, %v788
        %v790 = vpop.f32.mrb[0].mxu0
        %v791 = vpop.f32.mrb[0].mxu0
        %v792 = vadd.f32 0.0, %v791
        %v793 = vpop.f32.mrb[0].mxu0
        %794 = vmatprep.mubr.bf16.mxu0 0
        %795 = vmatmul.mubr.bf16.gmra.mrb[0].mxu0 %v719
        %v796 = vpop.f32.mrb[0].mxu0
        %v797 = vadd.f32 0.0, %v796
        %v798 = vpop.f32.mrb[0].mxu0
        %v799 = vpop.f32.mrb[0].mxu0
        %v800 = vadd.f32 0.0, %v799
        %v801 = vpop.f32.mrb[0].mxu0
        %802 = vmatprep.mubr.bf16.mxu0 0
        %803 = vmatmul.mubr.bf16.gmra.mrb[0].mxu0 %v722
        %v804 = vpop.f32.mrb[0].mxu0
        %v805 = vadd.f32 0.0, %v804
        %v806 = vpop.f32.mrb[0].mxu0
        %v807 = vpop.f32.mrb[0].mxu0
        %v808 = vadd.f32 0.0, %v807
        %v809 = vpop.f32.mrb[0].mxu0
        %810 = vmatprep.mubr.bf16.mxu0 0
        %811 = vmatmul.mubr.bf16.gmra.mrb[0].mxu0 %v725
        %v812 = vpop.f32.mrb[0].mxu0
        %v813 = vadd.f32 0.0, %v812
        %v814 = vpop.f32.mrb[0].mxu0
        %v815 = vpop.f32.mrb[0].mxu0
        %v816 = vadd.f32 0.0, %v815
        %v817 = vpop.f32.mrb[0].mxu0
        %818 = vmatprep.mubr.bf16.mxu0 0
        %819 = vmatmul.mubr.bf16.gmra.mrb[0].mxu0 %v728
        %v820 = vpop.f32.mrb[0].mxu0
        %v821 = vadd.f32 0.0, %v820
        %v822 = vpop.f32.mrb[0].mxu0
        %v823 = vpop.f32.mrb[0].mxu0
        %v824 = vadd.f32 0.0, %v823
        %v825 = vpop.f32.mrb[0].mxu0
        %826 = vdwg.mxu0
        %v827 = vadd.f32 %v633, %v765
        %v828 = vadd.f32 %v634, %v768
        %v829 = vadd.f32 %v635, %v773
        %v830 = vadd.f32 %v636, %v776
        %v831 = vadd.f32 %v637, %v781
        %v832 = vadd.f32 %v638, %v784
        %v833 = vadd.f32 %v639, %v789
        %v834 = vadd.f32 %v640, %v792
        %v835 = vadd.f32 %v641, %v797
        %v836 = vadd.f32 %v642, %v800
        %v837 = vadd.f32 %v643, %v805
        %v838 = vadd.f32 %v644, %v808
        %v839 = vadd.f32 %v645, %v813
        %v840 = vadd.f32 %v646, %v816
        %v841 = vadd.f32 %v647, %v821
        %v842 = vadd.f32 %v648, %v824
        %v843 = vpack.c.bf16 %v422, %v422
        %v844 = vpack.c.bf16 %v424, %v423
        %v845 = vpack.c.bf16 %v426, %v425
        %s846 = scalar_lea.vmem %s0, 64
        %v847 = vld [vmem:[%s846] sm:$0xf]
        %v848 = vld [vmem:[%s846 + $0x4] sm:$0xf]
        %v849 = vld [vmem:[%s846 + $0x8] sm:$0xf]
        %v850 = vld [vmem:[%s846 + $0xc] sm:$0xf]
        %v851 = vld [vmem:[%s846 + $0x10] sm:$0xf]
        %v852 = vld [vmem:[%s846 + $0x14] sm:$0xf]
        %v853 = vld [vmem:[%s846 + $0x18] sm:$0xf]
        %v854 = vld [vmem:[%s846 + $0x1c] sm:$0xf]
        %v855 = vld [vmem:[%s846 + $0x20] sm:$0xf]
        %v856 = vld [vmem:[%s846 + $0x24] sm:$0xf]
        %v857 = vld [vmem:[%s846 + $0x28] sm:$0xf]
        %v858 = vld [vmem:[%s846 + $0x2c] sm:$0xf]
        %v859 = vld [vmem:[%s846 + $0x30] sm:$0xf]
        %v860 = vld [vmem:[%s846 + $0x34] sm:$0xf]
        %v861 = vld [vmem:[%s846 + $0x38] sm:$0xf]
        %v862 = vld [vmem:[%s846 + $0x3c] sm:$0xf]
        %v879 = vunpack.c.l.b16 %v847
        %v880 = vunpack.c.l.b16 %v848
        %v881 = vunpack.c.l.b16 %v849
        %v882 = vunpack.c.l.b16 %v850
        %v883 = vunpack.c.l.b16 %v851
        %v884 = vunpack.c.l.b16 %v852
        %v885 = vunpack.c.l.b16 %v853
        %v886 = vunpack.c.l.b16 %v854
        %v887 = vunpack.c.l.b16 %v855
        %v888 = vunpack.c.l.b16 %v856
        %v889 = vunpack.c.l.b16 %v857
        %v890 = vunpack.c.l.b16 %v858
        %v891 = vunpack.c.l.b16 %v859
        %v892 = vunpack.c.l.b16 %v860
        %v893 = vunpack.c.l.b16 %v861
        %v894 = vunpack.c.l.b16 %v862
        %v895 = vpack.c.b16 %v880, %v879
        %v896 = vpack.c.b16 %v882, %v881
        %v897 = vpack.c.b16 %v884, %v883
        %v898 = vpack.c.b16 %v886, %v885
        %v899 = vpack.c.b16 %v888, %v887
        %v900 = vpack.c.b16 %v890, %v889
        %v901 = vpack.c.b16 %v892, %v891
        %v902 = vpack.c.b16 %v894, %v893
        %v904 = vsel %vm507, %v895, 0
        %v907 = vsel %vm507, %v896, 0
        %v910 = vsel %vm507, %v897, 0
        %v913 = vsel %vm507, %v898, 0
        %v916 = vsel %vm507, %v899, 0
        %v919 = vsel %vm507, %v900, 0
        %v922 = vsel %vm507, %v901, 0
        %v925 = vsel %vm507, %v902, 0
        %v928 = vsel %vm532, %v843, 0
        %930 = vmatprep.subr.bf16.mxu0 0
        %931 = vmatpush1.bf16.msra.mxu0 %v928
        %932 = vmatprep.subr.bf16.mxu0 0
        %933 = vmatpush1.bf16.msra.mxu0 0
        %934 = vmatprep.subr.bf16.mxu0 0
        %935 = vmatpush1.bf16.msra.mxu0 0
        %936 = vmatprep.subr.bf16.mxu0 0
        %937 = vmatpush1.bf16.msra.mxu0 0
        %938 = vmatprep.subr.bf16.mxu0 0
        %939 = vmatpush1.bf16.msra.mxu0 0
        %940 = vmatprep.subr.bf16.mxu0 0
        %941 = vmatpush1.bf16.msra.mxu0 0
        %942 = vmatprep.subr.bf16.mxu0 0
        %943 = vmatpush1.bf16.msra.mxu0 0
        %944 = vmatprep.subr.bf16.mxu0 0
        %945 = vmatpush1.bf16.msra.mxu0 0
        %946 = vmatprep.subr.bf16.mxu0 0
        %947 = vmatpush1.bf16.msra.mxu0 0
        %948 = vmatprep.subr.bf16.mxu0 0
        %949 = vmatpush1.bf16.msra.mxu0 0
        %950 = vmatprep.subr.bf16.mxu0 0
        %951 = vmatpush1.bf16.msra.mxu0 0
        %952 = vmatprep.subr.bf16.mxu0 0
        %953 = vmatpush1.bf16.msra.mxu0 0
        %954 = vmatprep.subr.bf16.mxu0 0
        %955 = vmatpush1.bf16.msra.mxu0 0
        %956 = vmatprep.subr.bf16.mxu0 0
        %957 = vmatpush1.bf16.msra.mxu0 0
        %958 = vmatprep.subr.bf16.mxu0 0
        %959 = vmatpush1.bf16.msra.mxu0 0
        %960 = vmatprep.subr.bf16.mxu0 0
        %961 = vmatpush1.bf16.msra.mxu0 0
        %962 = vmatprep.mubr.bf16.mxu0 0
        %963 = vmatmul.mubr.bf16.gmra.mrb[0].mxu0 %v904
        %v964 = vpop.f32.mrb[0].mxu0
        %v965 = vadd.f32 0.0, %v964
        %v966 = vpop.f32.mrb[0].mxu0
        %v967 = vpop.f32.mrb[0].mxu0
        %v968 = vadd.f32 0.0, %v967
        %v969 = vpop.f32.mrb[0].mxu0
        %970 = vmatprep.mubr.bf16.mxu0 0
        %971 = vmatmul.mubr.bf16.gmra.mrb[0].mxu0 %v907
        %v972 = vpop.f32.mrb[0].mxu0
        %v973 = vadd.f32 0.0, %v972
        %v974 = vpop.f32.mrb[0].mxu0
        %v975 = vpop.f32.mrb[0].mxu0
        %v976 = vadd.f32 0.0, %v975
        %v977 = vpop.f32.mrb[0].mxu0
        %978 = vmatprep.mubr.bf16.mxu0 0
        %979 = vmatmul.mubr.bf16.gmra.mrb[0].mxu0 %v910
        %v980 = vpop.f32.mrb[0].mxu0
        %v981 = vadd.f32 0.0, %v980
        %v982 = vpop.f32.mrb[0].mxu0
        %v983 = vpop.f32.mrb[0].mxu0
        %v984 = vadd.f32 0.0, %v983
        %v985 = vpop.f32.mrb[0].mxu0
        %986 = vmatprep.mubr.bf16.mxu0 0
        %987 = vmatmul.mubr.bf16.gmra.mrb[0].mxu0 %v913
        %v988 = vpop.f32.mrb[0].mxu0
        %v989 = vadd.f32 0.0, %v988
        %v990 = vpop.f32.mrb[0].mxu0
        %v991 = vpop.f32.mrb[0].mxu0
        %v992 = vadd.f32 0.0, %v991
        %v993 = vpop.f32.mrb[0].mxu0
        %994 = vmatprep.mubr.bf16.mxu0 0
        %995 = vmatmul.mubr.bf16.gmra.mrb[0].mxu0 %v916
        %v996 = vpop.f32.mrb[0].mxu0
        %v997 = vadd.f32 0.0, %v996
        %v998 = vpop.f32.mrb[0].mxu0
        %v999 = vpop.f32.mrb[0].mxu0
        %v1000 = vadd.f32 0.0, %v999
        %v1001 = vpop.f32.mrb[0].mxu0
        %1002 = vmatprep.mubr.bf16.mxu0 0
        %1003 = vmatmul.mubr.bf16.gmra.mrb[0].mxu0 %v919
        %v1004 = vpop.f32.mrb[0].mxu0
        %v1005 = vadd.f32 0.0, %v1004
        %v1006 = vpop.f32.mrb[0].mxu0
        %v1007 = vpop.f32.mrb[0].mxu0
        %v1008 = vadd.f32 0.0, %v1007
        %v1009 = vpop.f32.mrb[0].mxu0
        %1010 = vmatprep.mubr.bf16.mxu0 0
        %1011 = vmatmul.mubr.bf16.gmra.mrb[0].mxu0 %v922
        %v1012 = vpop.f32.mrb[0].mxu0
        %v1013 = vadd.f32 0.0, %v1012
        %v1014 = vpop.f32.mrb[0].mxu0
        %v1015 = vpop.f32.mrb[0].mxu0
        %v1016 = vadd.f32 0.0, %v1015
        %v1017 = vpop.f32.mrb[0].mxu0
        %1018 = vmatprep.mubr.bf16.mxu0 0
        %1019 = vmatmul.mubr.bf16.gmra.mrb[0].mxu0 %v925
        %v1020 = vpop.f32.mrb[0].mxu0
        %v1021 = vadd.f32 0.0, %v1020
        %v1022 = vpop.f32.mrb[0].mxu0
        %v1023 = vpop.f32.mrb[0].mxu0
        %v1024 = vadd.f32 0.0, %v1023
        %v1025 = vpop.f32.mrb[0].mxu0
        %1026 = vdwg.mxu0
        %v1027 = vadd.f32 %v827, %v965
        %v1028 = vadd.f32 %v828, %v968
        %v1029 = vadd.f32 %v829, %v973
        %v1030 = vadd.f32 %v830, %v976
        %v1031 = vadd.f32 %v831, %v981
        %v1032 = vadd.f32 %v832, %v984
        %v1033 = vadd.f32 %v833, %v989
        %v1034 = vadd.f32 %v834, %v992
        %v1035 = vadd.f32 %v835, %v997
        %v1036 = vadd.f32 %v836, %v1000
        %v1037 = vadd.f32 %v837, %v1005
        %v1038 = vadd.f32 %v838, %v1008
        %v1039 = vadd.f32 %v839, %v1013
        %v1040 = vadd.f32 %v840, %v1016
        %v1041 = vadd.f32 %v841, %v1021
        %v1042 = vadd.f32 %v842, %v1024
        %s1043 = scalar_lea.vmem %s1, 64
        %v1044 = vld [vmem:[%s1043] sm:$0xf]
        %v1045 = vld [vmem:[%s1043 + $0x4] sm:$0xf]
        %v1046 = vld [vmem:[%s1043 + $0x8] sm:$0xf]
        %v1047 = vld [vmem:[%s1043 + $0xc] sm:$0xf]
        %v1048 = vld [vmem:[%s1043 + $0x10] sm:$0xf]
        %v1049 = vld [vmem:[%s1043 + $0x14] sm:$0xf]
        %v1050 = vld [vmem:[%s1043 + $0x18] sm:$0xf]
        %v1051 = vld [vmem:[%s1043 + $0x1c] sm:$0xf]
        %v1052 = vld [vmem:[%s1043 + $0x20] sm:$0xf]
        %v1053 = vld [vmem:[%s1043 + $0x24] sm:$0xf]
        %v1054 = vld [vmem:[%s1043 + $0x28] sm:$0xf]
        %v1055 = vld [vmem:[%s1043 + $0x2c] sm:$0xf]
        %v1056 = vld [vmem:[%s1043 + $0x30] sm:$0xf]
        %v1057 = vld [vmem:[%s1043 + $0x34] sm:$0xf]
        %v1058 = vld [vmem:[%s1043 + $0x38] sm:$0xf]
        %v1059 = vld [vmem:[%s1043 + $0x3c] sm:$0xf]
        %v1076 = vunpack.c.l.b16 %v1044
        %v1077 = vunpack.c.l.b16 %v1045
        %v1078 = vunpack.c.l.b16 %v1046
        %v1079 = vunpack.c.l.b16 %v1047
        %v1080 = vunpack.c.l.b16 %v1048
        %v1081 = vunpack.c.l.b16 %v1049
        %v1082 = vunpack.c.l.b16 %v1050
        %v1083 = vunpack.c.l.b16 %v1051
        %v1084 = vunpack.c.l.b16 %v1052
        %v1085 = vunpack.c.l.b16 %v1053
        %v1086 = vunpack.c.l.b16 %v1054
        %v1087 = vunpack.c.l.b16 %v1055
        %v1088 = vunpack.c.l.b16 %v1056
        %v1089 = vunpack.c.l.b16 %v1057
        %v1090 = vunpack.c.l.b16 %v1058
        %v1091 = vunpack.c.l.b16 %v1059
        %v1092 = vpack.c.b16 %v1077, %v1076
        %v1093 = vpack.c.b16 %v1079, %v1078
        %v1094 = vpack.c.b16 %v1081, %v1080
        %v1095 = vpack.c.b16 %v1083, %v1082
        %v1096 = vpack.c.b16 %v1085, %v1084
        %v1097 = vpack.c.b16 %v1087, %v1086
        %v1098 = vpack.c.b16 %v1089, %v1088
        %v1099 = vpack.c.b16 %v1091, %v1090
        %v1101 = vsel %vm705, %v1092, 0
        %v1104 = vsel %vm705, %v1093, 0
        %v1107 = vsel %vm705, %v1094, 0
        %v1110 = vsel %vm705, %v1095, 0
        %v1113 = vsel %vm705, %v1096, 0
        %v1116 = vsel %vm705, %v1097, 0
        %v1119 = vsel %vm705, %v1098, 0
        %v1122 = vsel %vm705, %v1099, 0
        %1124 = vmatprep.subr.bf16.mxu0 0
        %1125 = vmatpush1.bf16.msra.mxu0 %v844
        %1126 = vmatprep.subr.bf16.mxu0 0
        %1127 = vmatpush1.bf16.msra.mxu0 %v845
        %1128 = vmatprep.subr.bf16.mxu0 0
        %1129 = vmatpush1.bf16.msra.mxu0 0
        %1130 = vmatprep.subr.bf16.mxu0 0
        %1131 = vmatpush1.bf16.msra.mxu0 0
        %1132 = vmatprep.subr.bf16.mxu0 0
        %1133 = vmatpush1.bf16.msra.mxu0 0
        %1134 = vmatprep.subr.bf16.mxu0 0
        %1135 = vmatpush1.bf16.msra.mxu0 0
        %1136 = vmatprep.subr.bf16.mxu0 0
        %1137 = vmatpush1.bf16.msra.mxu0 0
        %1138 = vmatprep.subr.bf16.mxu0 0
        %1139 = vmatpush1.bf16.msra.mxu0 0
        %1140 = vmatprep.subr.bf16.mxu0 0
        %1141 = vmatpush1.bf16.msra.mxu0 0
        %1142 = vmatprep.subr.bf16.mxu0 0
        %1143 = vmatpush1.bf16.msra.mxu0 0
        %1144 = vmatprep.subr.bf16.mxu0 0
        %1145 = vmatpush1.bf16.msra.mxu0 0
        %1146 = vmatprep.subr.bf16.mxu0 0
        %1147 = vmatpush1.bf16.msra.mxu0 0
        %1148 = vmatprep.subr.bf16.mxu0 0
        %1149 = vmatpush1.bf16.msra.mxu0 0
        %1150 = vmatprep.subr.bf16.mxu0 0
        %1151 = vmatpush1.bf16.msra.mxu0 0
        %1152 = vmatprep.subr.bf16.mxu0 0
        %1153 = vmatpush1.bf16.msra.mxu0 0
        %1154 = vmatprep.subr.bf16.mxu0 0
        %1155 = vmatpush1.bf16.msra.mxu0 0
        %1156 = vmatprep.mubr.bf16.mxu0 0
        %1157 = vmatmul.mubr.bf16.gmra.mrb[0].mxu0 %v1101
        %v1158 = vpop.f32.mrb[0].mxu0
        %v1159 = vadd.f32 0.0, %v1158
        %v1160 = vpop.f32.mrb[0].mxu0
        %v1161 = vpop.f32.mrb[0].mxu0
        %v1162 = vadd.f32 0.0, %v1161
        %v1163 = vpop.f32.mrb[0].mxu0
        %1164 = vmatprep.mubr.bf16.mxu0 0
        %1165 = vmatmul.mubr.bf16.gmra.mrb[0].mxu0 %v1104
        %v1166 = vpop.f32.mrb[0].mxu0
        %v1167 = vadd.f32 0.0, %v1166
        %v1168 = vpop.f32.mrb[0].mxu0
        %v1169 = vpop.f32.mrb[0].mxu0
        %v1170 = vadd.f32 0.0, %v1169
        %v1171 = vpop.f32.mrb[0].mxu0
        %1172 = vmatprep.mubr.bf16.mxu0 0
        %1173 = vmatmul.mubr.bf16.gmra.mrb[0].mxu0 %v1107
        %v1174 = vpop.f32.mrb[0].mxu0
        %v1175 = vadd.f32 0.0, %v1174
        %v1176 = vpop.f32.mrb[0].mxu0
        %v1177 = vpop.f32.mrb[0].mxu0
        %v1178 = vadd.f32 0.0, %v1177
        %v1179 = vpop.f32.mrb[0].mxu0
        %1180 = vmatprep.mubr.bf16.mxu0 0
        %1181 = vmatmul.mubr.bf16.gmra.mrb[0].mxu0 %v1110
        %v1182 = vpop.f32.mrb[0].mxu0
        %v1183 = vadd.f32 0.0, %v1182
        %v1184 = vpop.f32.mrb[0].mxu0
        %v1185 = vpop.f32.mrb[0].mxu0
        %v1186 = vadd.f32 0.0, %v1185
        %v1187 = vpop.f32.mrb[0].mxu0
        %1188 = vmatprep.mubr.bf16.mxu0 0
        %1189 = vmatmul.mubr.bf16.gmra.mrb[0].mxu0 %v1113
        %v1190 = vpop.f32.mrb[0].mxu0
        %v1191 = vadd.f32 0.0, %v1190
        %v1192 = vpop.f32.mrb[0].mxu0
        %v1193 = vpop.f32.mrb[0].mxu0
        %v1194 = vadd.f32 0.0, %v1193
        %v1195 = vpop.f32.mrb[0].mxu0
        %1196 = vmatprep.mubr.bf16.mxu0 0
        %1197 = vmatmul.mubr.bf16.gmra.mrb[0].mxu0 %v1116
        %v1198 = vpop.f32.mrb[0].mxu0
        %v1199 = vadd.f32 0.0, %v1198
        %v1200 = vpop.f32.mrb[0].mxu0
        %v1201 = vpop.f32.mrb[0].mxu0
        %v1202 = vadd.f32 0.0, %v1201
        %v1203 = vpop.f32.mrb[0].mxu0
        %1204 = vmatprep.mubr.bf16.mxu0 0
        %1205 = vmatmul.mubr.bf16.gmra.mrb[0].mxu0 %v1119
        %v1206 = vpop.f32.mrb[0].mxu0
        %v1207 = vadd.f32 0.0, %v1206
        %v1208 = vpop.f32.mrb[0].mxu0
        %v1209 = vpop.f32.mrb[0].mxu0
        %v1210 = vadd.f32 0.0, %v1209
        %v1211 = vpop.f32.mrb[0].mxu0
        %1212 = vmatprep.mubr.bf16.mxu0 0
        %1213 = vmatmul.mubr.bf16.gmra.mrb[0].mxu0 %v1122
        %v1214 = vpop.f32.mrb[0].mxu0
        %v1215 = vadd.f32 0.0, %v1214
        %v1216 = vpop.f32.mrb[0].mxu0
        %v1217 = vpop.f32.mrb[0].mxu0
        %v1218 = vadd.f32 0.0, %v1217
        %v1219 = vpop.f32.mrb[0].mxu0
        %1220 = vdwg.mxu0
        %v1221 = vadd.f32 %v1027, %v1159
        %v1222 = vadd.f32 %v1028, %v1162
        %v1223 = vadd.f32 %v1029, %v1167
        %v1224 = vadd.f32 %v1030, %v1170
        %v1225 = vadd.f32 %v1031, %v1175
        %v1226 = vadd.f32 %v1032, %v1178
        %v1227 = vadd.f32 %v1033, %v1183
        %v1228 = vadd.f32 %v1034, %v1186
        %v1229 = vadd.f32 %v1035, %v1191
        %v1230 = vadd.f32 %v1036, %v1194
        %v1231 = vadd.f32 %v1037, %v1199
        %v1232 = vadd.f32 %v1038, %v1202
        %v1233 = vadd.f32 %v1039, %v1207
        %v1234 = vadd.f32 %v1040, %v1210
        %v1235 = vadd.f32 %v1041, %v1215
        %v1236 = vadd.f32 %v1042, %v1218
        %1237 = vrot.lane.b32.xlu0 %v422, 127
        %v1238 = vpop.permute.xlu0 %1237
        %v1239 = vadd.s32 %v430, 1
        %vm1240 = vcmp.ge.s32.totalorder %v1239, 0
        %vm1241 = vcmp.lt.s32.totalorder %v1239, 128
        %vm1242 = vmand %vm1240, %vm1241
        %v1243 = vsel %vm1242, %v1238, 0.0
        %v1244 = vpack.c.bf16 %v1243, %v1243
        %1245 = vrot.lane.b32.xlu0 %v423, 127
        %v1246 = vpop.permute.xlu0 %1245
        %1247 = vrot.lane.b32.xlu0 %v424, 127
        %v1248 = vpop.permute.xlu0 %1247
        %1249 = vrot.lane.b32.xlu0 %v425, 127
        %v1250 = vpop.permute.xlu0 %1249
        %1251 = vrot.lane.b32.xlu0 %v426, 127
        %v1252 = vpop.permute.xlu0 %1251
        %v1253 = vsel %vm1242, %v1246, 0.0
        %v1254 = vsel %vm1242, %v1248, 0.0
        %v1255 = vsel %vm1242, %v1250, 0.0
        %v1256 = vsel %vm1242, %v1252, 0.0
        %v1257 = vpack.c.bf16 %v1254, %v1253
        %v1258 = vpack.c.bf16 %v1256, %v1255
        %s1259 = scalar_lea.vmem %s0, 128
        %v1260 = vld [vmem:[%s1259] sm:$0xf]
        %v1261 = vld [vmem:[%s1259 + $0x4] sm:$0xf]
        %v1262 = vld [vmem:[%s1259 + $0x8] sm:$0xf]
        %v1263 = vld [vmem:[%s1259 + $0xc] sm:$0xf]
        %v1264 = vld [vmem:[%s1259 + $0x10] sm:$0xf]
        %v1265 = vld [vmem:[%s1259 + $0x14] sm:$0xf]
        %v1266 = vld [vmem:[%s1259 + $0x18] sm:$0xf]
        %v1267 = vld [vmem:[%s1259 + $0x1c] sm:$0xf]
        %v1268 = vld [vmem:[%s1259 + $0x20] sm:$0xf]
        %v1269 = vld [vmem:[%s1259 + $0x24] sm:$0xf]
        %v1270 = vld [vmem:[%s1259 + $0x28] sm:$0xf]
        %v1271 = vld [vmem:[%s1259 + $0x2c] sm:$0xf]
        %v1272 = vld [vmem:[%s1259 + $0x30] sm:$0xf]
        %v1273 = vld [vmem:[%s1259 + $0x34] sm:$0xf]
        %v1274 = vld [vmem:[%s1259 + $0x38] sm:$0xf]
        %v1275 = vld [vmem:[%s1259 + $0x3c] sm:$0xf]
        %v1292 = vunpack.c.l.b16 %v1260
        %v1293 = vunpack.c.l.b16 %v1261
        %v1294 = vunpack.c.l.b16 %v1262
        %v1295 = vunpack.c.l.b16 %v1263
        %v1296 = vunpack.c.l.b16 %v1264
        %v1297 = vunpack.c.l.b16 %v1265
        %v1298 = vunpack.c.l.b16 %v1266
        %v1299 = vunpack.c.l.b16 %v1267
        %v1300 = vunpack.c.l.b16 %v1268
        %v1301 = vunpack.c.l.b16 %v1269
        %v1302 = vunpack.c.l.b16 %v1270
        %v1303 = vunpack.c.l.b16 %v1271
        %v1304 = vunpack.c.l.b16 %v1272
        %v1305 = vunpack.c.l.b16 %v1273
        %v1306 = vunpack.c.l.b16 %v1274
        %v1307 = vunpack.c.l.b16 %v1275
        %v1308 = vpack.c.b16 %v1293, %v1292
        %v1309 = vpack.c.b16 %v1295, %v1294
        %v1310 = vpack.c.b16 %v1297, %v1296
        %v1311 = vpack.c.b16 %v1299, %v1298
        %v1312 = vpack.c.b16 %v1301, %v1300
        %v1313 = vpack.c.b16 %v1303, %v1302
        %v1314 = vpack.c.b16 %v1305, %v1304
        %v1315 = vpack.c.b16 %v1307, %v1306
        %v1317 = vsel %vm507, %v1308, 0
        %v1320 = vsel %vm507, %v1309, 0
        %v1323 = vsel %vm507, %v1310, 0
        %v1326 = vsel %vm507, %v1311, 0
        %v1329 = vsel %vm507, %v1312, 0
        %v1332 = vsel %vm507, %v1313, 0
        %v1335 = vsel %vm507, %v1314, 0
        %v1338 = vsel %vm507, %v1315, 0
        %v1341 = vsel %vm532, %v1244, 0
        %1343 = vmatprep.subr.bf16.mxu0 0
        %1344 = vmatpush1.bf16.msra.mxu0 %v1341
        %1345 = vmatprep.subr.bf16.mxu0 0
        %1346 = vmatpush1.bf16.msra.mxu0 0
        %1347 = vmatprep.subr.bf16.mxu0 0
        %1348 = vmatpush1.bf16.msra.mxu0 0
        %1349 = vmatprep.subr.bf16.mxu0 0
        %1350 = vmatpush1.bf16.msra.mxu0 0
        %1351 = vmatprep.subr.bf16.mxu0 0
        %1352 = vmatpush1.bf16.msra.mxu0 0
        %1353 = vmatprep.subr.bf16.mxu0 0
        %1354 = vmatpush1.bf16.msra.mxu0 0
        %1355 = vmatprep.subr.bf16.mxu0 0
        %1356 = vmatpush1.bf16.msra.mxu0 0
        %1357 = vmatprep.subr.bf16.mxu0 0
        %1358 = vmatpush1.bf16.msra.mxu0 0
        %1359 = vmatprep.subr.bf16.mxu0 0
        %1360 = vmatpush1.bf16.msra.mxu0 0
        %1361 = vmatprep.subr.bf16.mxu0 0
        %1362 = vmatpush1.bf16.msra.mxu0 0
        %1363 = vmatprep.subr.bf16.mxu0 0
        %1364 = vmatpush1.bf16.msra.mxu0 0
        %1365 = vmatprep.subr.bf16.mxu0 0
        %1366 = vmatpush1.bf16.msra.mxu0 0
        %1367 = vmatprep.subr.bf16.mxu0 0
        %1368 = vmatpush1.bf16.msra.mxu0 0
        %1369 = vmatprep.subr.bf16.mxu0 0
        %1370 = vmatpush1.bf16.msra.mxu0 0
        %1371 = vmatprep.subr.bf16.mxu0 0
        %1372 = vmatpush1.bf16.msra.mxu0 0
        %1373 = vmatprep.subr.bf16.mxu0 0
        %1374 = vmatpush1.bf16.msra.mxu0 0
        %1375 = vmatprep.mubr.bf16.mxu0 0
        %1376 = vmatmul.mubr.bf16.gmra.mrb[0].mxu0 %v1317
        %v1377 = vpop.f32.mrb[0].mxu0
        %v1378 = vadd.f32 0.0, %v1377
        %v1379 = vpop.f32.mrb[0].mxu0
        %v1380 = vpop.f32.mrb[0].mxu0
        %v1381 = vadd.f32 0.0, %v1380
        %v1382 = vpop.f32.mrb[0].mxu0
        %1383 = vmatprep.mubr.bf16.mxu0 0
        %1384 = vmatmul.mubr.bf16.gmra.mrb[0].mxu0 %v1320
        %v1385 = vpop.f32.mrb[0].mxu0
        %v1386 = vadd.f32 0.0, %v1385
        %v1387 = vpop.f32.mrb[0].mxu0
        %v1388 = vpop.f32.mrb[0].mxu0
        %v1389 = vadd.f32 0.0, %v1388
        %v1390 = vpop.f32.mrb[0].mxu0
        %1391 = vmatprep.mubr.bf16.mxu0 0
        %1392 = vmatmul.mubr.bf16.gmra.mrb[0].mxu0 %v1323
        %v1393 = vpop.f32.mrb[0].mxu0
        %v1394 = vadd.f32 0.0, %v1393
        %v1395 = vpop.f32.mrb[0].mxu0
        %v1396 = vpop.f32.mrb[0].mxu0
        %v1397 = vadd.f32 0.0, %v1396
        %v1398 = vpop.f32.mrb[0].mxu0
        %1399 = vmatprep.mubr.bf16.mxu0 0
        %1400 = vmatmul.mubr.bf16.gmra.mrb[0].mxu0 %v1326
        %v1401 = vpop.f32.mrb[0].mxu0
        %v1402 = vadd.f32 0.0, %v1401
        %v1403 = vpop.f32.mrb[0].mxu0
        %v1404 = vpop.f32.mrb[0].mxu0
        %v1405 = vadd.f32 0.0, %v1404
        %v1406 = vpop.f32.mrb[0].mxu0
        %1407 = vmatprep.mubr.bf16.mxu0 0
        %1408 = vmatmul.mubr.bf16.gmra.mrb[0].mxu0 %v1329
        %v1409 = vpop.f32.mrb[0].mxu0
        %v1410 = vadd.f32 0.0, %v1409
        %v1411 = vpop.f32.mrb[0].mxu0
        %v1412 = vpop.f32.mrb[0].mxu0
        %v1413 = vadd.f32 0.0, %v1412
        %v1414 = vpop.f32.mrb[0].mxu0
        %1415 = vmatprep.mubr.bf16.mxu0 0
        %1416 = vmatmul.mubr.bf16.gmra.mrb[0].mxu0 %v1332
        %v1417 = vpop.f32.mrb[0].mxu0
        %v1418 = vadd.f32 0.0, %v1417
        %v1419 = vpop.f32.mrb[0].mxu0
        %v1420 = vpop.f32.mrb[0].mxu0
        %v1421 = vadd.f32 0.0, %v1420
        %v1422 = vpop.f32.mrb[0].mxu0
        %1423 = vmatprep.mubr.bf16.mxu0 0
        %1424 = vmatmul.mubr.bf16.gmra.mrb[0].mxu0 %v1335
        %v1425 = vpop.f32.mrb[0].mxu0
        %v1426 = vadd.f32 0.0, %v1425
        %v1427 = vpop.f32.mrb[0].mxu0
        %v1428 = vpop.f32.mrb[0].mxu0
        %v1429 = vadd.f32 0.0, %v1428
        %v1430 = vpop.f32.mrb[0].mxu0
        %1431 = vmatprep.mubr.bf16.mxu0 0
        %1432 = vmatmul.mubr.bf16.gmra.mrb[0].mxu0 %v1338
        %v1433 = vpop.f32.mrb[0].mxu0
        %v1434 = vadd.f32 0.0, %v1433
        %v1435 = vpop.f32.mrb[0].mxu0
        %v1436 = vpop.f32.mrb[0].mxu0
        %v1437 = vadd.f32 0.0, %v1436
        %v1438 = vpop.f32.mrb[0].mxu0
        %1439 = vdwg.mxu0
        %v1440 = vadd.f32 %v1221, %v1378
        %v1441 = vadd.f32 %v1222, %v1381
        %v1442 = vadd.f32 %v1223, %v1386
        %v1443 = vadd.f32 %v1224, %v1389
        %v1444 = vadd.f32 %v1225, %v1394
        %v1445 = vadd.f32 %v1226, %v1397
        %v1446 = vadd.f32 %v1227, %v1402
        %v1447 = vadd.f32 %v1228, %v1405
        %v1448 = vadd.f32 %v1229, %v1410
        %v1449 = vadd.f32 %v1230, %v1413
        %v1450 = vadd.f32 %v1231, %v1418
        %v1451 = vadd.f32 %v1232, %v1421
        %v1452 = vadd.f32 %v1233, %v1426
        %v1453 = vadd.f32 %v1234, %v1429
        %v1454 = vadd.f32 %v1235, %v1434
        %v1455 = vadd.f32 %v1236, %v1437
        %s1456 = scalar_lea.vmem %s1, 128
        %v1457 = vld [vmem:[%s1456] sm:$0xf]
        %v1458 = vld [vmem:[%s1456 + $0x4] sm:$0xf]
        %v1459 = vld [vmem:[%s1456 + $0x8] sm:$0xf]
        %v1460 = vld [vmem:[%s1456 + $0xc] sm:$0xf]
        %v1461 = vld [vmem:[%s1456 + $0x10] sm:$0xf]
        %v1462 = vld [vmem:[%s1456 + $0x14] sm:$0xf]
        %v1463 = vld [vmem:[%s1456 + $0x18] sm:$0xf]
        %v1464 = vld [vmem:[%s1456 + $0x1c] sm:$0xf]
        %v1465 = vld [vmem:[%s1456 + $0x20] sm:$0xf]
        %v1466 = vld [vmem:[%s1456 + $0x24] sm:$0xf]
        %v1467 = vld [vmem:[%s1456 + $0x28] sm:$0xf]
        %v1468 = vld [vmem:[%s1456 + $0x2c] sm:$0xf]
        %v1469 = vld [vmem:[%s1456 + $0x30] sm:$0xf]
        %v1470 = vld [vmem:[%s1456 + $0x34] sm:$0xf]
        %v1471 = vld [vmem:[%s1456 + $0x38] sm:$0xf]
        %v1472 = vld [vmem:[%s1456 + $0x3c] sm:$0xf]
        %v1489 = vunpack.c.l.b16 %v1457
        %v1490 = vunpack.c.l.b16 %v1458
        %v1491 = vunpack.c.l.b16 %v1459
        %v1492 = vunpack.c.l.b16 %v1460
        %v1493 = vunpack.c.l.b16 %v1461
        %v1494 = vunpack.c.l.b16 %v1462
        %v1495 = vunpack.c.l.b16 %v1463
        %v1496 = vunpack.c.l.b16 %v1464
        %v1497 = vunpack.c.l.b16 %v1465
        %v1498 = vunpack.c.l.b16 %v1466
        %v1499 = vunpack.c.l.b16 %v1467
        %v1500 = vunpack.c.l.b16 %v1468
        %v1501 = vunpack.c.l.b16 %v1469
        %v1502 = vunpack.c.l.b16 %v1470
        %v1503 = vunpack.c.l.b16 %v1471
        %v1504 = vunpack.c.l.b16 %v1472
        %v1505 = vpack.c.b16 %v1490, %v1489
        %v1506 = vpack.c.b16 %v1492, %v1491
        %v1507 = vpack.c.b16 %v1494, %v1493
        %v1508 = vpack.c.b16 %v1496, %v1495
        %v1509 = vpack.c.b16 %v1498, %v1497
        %v1510 = vpack.c.b16 %v1500, %v1499
        %v1511 = vpack.c.b16 %v1502, %v1501
        %v1512 = vpack.c.b16 %v1504, %v1503
        %v1514 = vsel %vm705, %v1505, 0
        %v1517 = vsel %vm705, %v1506, 0
        %v1520 = vsel %vm705, %v1507, 0
        %v1523 = vsel %vm705, %v1508, 0
        %v1526 = vsel %vm705, %v1509, 0
        %v1529 = vsel %vm705, %v1510, 0
        %v1532 = vsel %vm705, %v1511, 0
        %v1535 = vsel %vm705, %v1512, 0
        %1537 = vmatprep.subr.bf16.mxu0 0
        %1538 = vmatpush1.bf16.msra.mxu0 %v1257
        %1539 = vmatprep.subr.bf16.mxu0 0
        %1540 = vmatpush1.bf16.msra.mxu0 %v1258
        %1541 = vmatprep.subr.bf16.mxu0 0
        %1542 = vmatpush1.bf16.msra.mxu0 0
        %1543 = vmatprep.subr.bf16.mxu0 0
        %1544 = vmatpush1.bf16.msra.mxu0 0
        %1545 = vmatprep.subr.bf16.mxu0 0
        %1546 = vmatpush1.bf16.msra.mxu0 0
        %1547 = vmatprep.subr.bf16.mxu0 0
        %1548 = vmatpush1.bf16.msra.mxu0 0
        %1549 = vmatprep.subr.bf16.mxu0 0
        %1550 = vmatpush1.bf16.msra.mxu0 0
        %1551 = vmatprep.subr.bf16.mxu0 0
        %1552 = vmatpush1.bf16.msra.mxu0 0
        %1553 = vmatprep.subr.bf16.mxu0 0
        %1554 = vmatpush1.bf16.msra.mxu0 0
        %1555 = vmatprep.subr.bf16.mxu0 0
        %1556 = vmatpush1.bf16.msra.mxu0 0
        %1557 = vmatprep.subr.bf16.mxu0 0
        %1558 = vmatpush1.bf16.msra.mxu0 0
        %1559 = vmatprep.subr.bf16.mxu0 0
        %1560 = vmatpush1.bf16.msra.mxu0 0
        %1561 = vmatprep.subr.bf16.mxu0 0
        %1562 = vmatpush1.bf16.msra.mxu0 0
        %1563 = vmatprep.subr.bf16.mxu0 0
        %1564 = vmatpush1.bf16.msra.mxu0 0
        %1565 = vmatprep.subr.bf16.mxu0 0
        %1566 = vmatpush1.bf16.msra.mxu0 0
        %1567 = vmatprep.subr.bf16.mxu0 0
        %1568 = vmatpush1.bf16.msra.mxu0 0
        %1569 = vmatprep.mubr.bf16.mxu0 0
        %1570 = vmatmul.mubr.bf16.gmra.mrb[0].mxu0 %v1514
        %v1571 = vpop.f32.mrb[0].mxu0
        %v1572 = vadd.f32 0.0, %v1571
        %v1573 = vpop.f32.mrb[0].mxu0
        %v1574 = vpop.f32.mrb[0].mxu0
        %v1575 = vadd.f32 0.0, %v1574
        %v1576 = vpop.f32.mrb[0].mxu0
        %1577 = vmatprep.mubr.bf16.mxu0 0
        %1578 = vmatmul.mubr.bf16.gmra.mrb[0].mxu0 %v1517
        %v1579 = vpop.f32.mrb[0].mxu0
        %v1580 = vadd.f32 0.0, %v1579
        %v1581 = vpop.f32.mrb[0].mxu0
        %v1582 = vpop.f32.mrb[0].mxu0
        %v1583 = vadd.f32 0.0, %v1582
        %v1584 = vpop.f32.mrb[0].mxu0
        %1585 = vmatprep.mubr.bf16.mxu0 0
        %1586 = vmatmul.mubr.bf16.gmra.mrb[0].mxu0 %v1520
        %v1587 = vpop.f32.mrb[0].mxu0
        %v1588 = vadd.f32 0.0, %v1587
        %v1589 = vpop.f32.mrb[0].mxu0
        %v1590 = vpop.f32.mrb[0].mxu0
        %v1591 = vadd.f32 0.0, %v1590
        %v1592 = vpop.f32.mrb[0].mxu0
        %1593 = vmatprep.mubr.bf16.mxu0 0
        %1594 = vmatmul.mubr.bf16.gmra.mrb[0].mxu0 %v1523
        %v1595 = vpop.f32.mrb[0].mxu0
        %v1596 = vadd.f32 0.0, %v1595
        %v1597 = vpop.f32.mrb[0].mxu0
        %v1598 = vpop.f32.mrb[0].mxu0
        %v1599 = vadd.f32 0.0, %v1598
        %v1600 = vpop.f32.mrb[0].mxu0
        %1601 = vmatprep.mubr.bf16.mxu0 0
        %1602 = vmatmul.mubr.bf16.gmra.mrb[0].mxu0 %v1526
        %v1603 = vpop.f32.mrb[0].mxu0
        %v1604 = vadd.f32 0.0, %v1603
        %v1605 = vpop.f32.mrb[0].mxu0
        %v1606 = vpop.f32.mrb[0].mxu0
        %v1607 = vadd.f32 0.0, %v1606
        %v1608 = vpop.f32.mrb[0].mxu0
        %1609 = vmatprep.mubr.bf16.mxu0 0
        %1610 = vmatmul.mubr.bf16.gmra.mrb[0].mxu0 %v1529
        %v1611 = vpop.f32.mrb[0].mxu0
        %v1612 = vadd.f32 0.0, %v1611
        %v1613 = vpop.f32.mrb[0].mxu0
        %v1614 = vpop.f32.mrb[0].mxu0
        %v1615 = vadd.f32 0.0, %v1614
        %v1616 = vpop.f32.mrb[0].mxu0
        %1617 = vmatprep.mubr.bf16.mxu0 0
        %1618 = vmatmul.mubr.bf16.gmra.mrb[0].mxu0 %v1532
        %v1619 = vpop.f32.mrb[0].mxu0
        %v1620 = vadd.f32 0.0, %v1619
        %v1621 = vpop.f32.mrb[0].mxu0
        %v1622 = vpop.f32.mrb[0].mxu0
        %v1623 = vadd.f32 0.0, %v1622
        %v1624 = vpop.f32.mrb[0].mxu0
        %1625 = vmatprep.mubr.bf16.mxu0 0
        %1626 = vmatmul.mubr.bf16.gmra.mrb[0].mxu0 %v1535
        %v1627 = vpop.f32.mrb[0].mxu0
        %v1628 = vadd.f32 0.0, %v1627
        %v1629 = vpop.f32.mrb[0].mxu0
        %v1630 = vpop.f32.mrb[0].mxu0
        %v1631 = vadd.f32 0.0, %v1630
        %v1632 = vpop.f32.mrb[0].mxu0
        %1633 = vdwg.mxu0
        %v1634 = vadd.f32 %v1440, %v1572
        %v1635 = vadd.f32 %v1441, %v1575
        %v1636 = vadd.f32 %v1442, %v1580
        %v1637 = vadd.f32 %v1443, %v1583
        %v1638 = vadd.f32 %v1444, %v1588
        %v1639 = vadd.f32 %v1445, %v1591
        %v1640 = vadd.f32 %v1446, %v1596
        %v1641 = vadd.f32 %v1447, %v1599
        %v1642 = vadd.f32 %v1448, %v1604
        %v1643 = vadd.f32 %v1449, %v1607
        %v1644 = vadd.f32 %v1450, %v1612
        %v1645 = vadd.f32 %v1451, %v1615
        %v1646 = vadd.f32 %v1452, %v1620
        %v1647 = vadd.f32 %v1453, %v1623
        %v1648 = vadd.f32 %v1454, %v1628
        %v1649 = vadd.f32 %v1455, %v1631
        %v1650 = vxor.u32 %v1634, 2147483648
        %v1651 = vxor.u32 %v1635, 2147483648
        %v1652 = vxor.u32 %v1636, 2147483648
        %v1653 = vxor.u32 %v1637, 2147483648
        %v1654 = vmul.f32 %v1650, 1.442695
        %v1655 = vpow.pop %v1654
        %v1656 = vmul.f32 %v1651, 1.442695
        %v1657 = vpow.pop %v1656
        %v1658 = vmul.f32 %v1652, 1.442695
        %v1659 = vpow.pop %v1658
        %v1660 = vmul.f32 %v1653, 1.442695
        %v1661 = vpow.pop %v1660
        %v1662 = vadd.f32 %v1655, 1.0
        %v1663 = vadd.f32 %v1657, 1.0
        %v1664 = vadd.f32 %v1659, 1.0
        %v1665 = vadd.f32 %v1661, 1.0
        %v1666 = vrcp.pop %v1662
        %v1667 = vmul.f32 1.0, %v1666
        %v1668 = vrcp.pop %v1663
        %v1669 = vmul.f32 1.0, %v1668
        %v1670 = vrcp.pop %v1664
        %v1671 = vmul.f32 1.0, %v1670
        %v1672 = vrcp.pop %v1665
        %v1673 = vmul.f32 1.0, %v1672
        %v1674 = vxor.u32 %v1638, 2147483648
        %v1675 = vxor.u32 %v1639, 2147483648
        %v1676 = vxor.u32 %v1640, 2147483648
        %v1677 = vxor.u32 %v1641, 2147483648
        %v1678 = vmul.f32 %v1674, 1.442695
        %v1679 = vpow.pop %v1678
        %v1680 = vmul.f32 %v1675, 1.442695
        %v1681 = vpow.pop %v1680
        %v1682 = vmul.f32 %v1676, 1.442695
        %v1683 = vpow.pop %v1682
        %v1684 = vmul.f32 %v1677, 1.442695
        %v1685 = vpow.pop %v1684
        %v1686 = vadd.f32 %v1679, 1.0
        %v1687 = vadd.f32 %v1681, 1.0
        %v1688 = vadd.f32 %v1683, 1.0
        %v1689 = vadd.f32 %v1685, 1.0
        %v1690 = vrcp.pop %v1686
        %v1691 = vmul.f32 1.0, %v1690
        %v1692 = vrcp.pop %v1687
        %v1693 = vmul.f32 1.0, %v1692
        %v1694 = vrcp.pop %v1688
        %v1695 = vmul.f32 1.0, %v1694
        %v1696 = vrcp.pop %v1689
        %v1697 = vmul.f32 1.0, %v1696
        %v1698 = vxor.u32 %v1642, 2147483648
        %v1699 = vxor.u32 %v1643, 2147483648
        %v1700 = vxor.u32 %v1644, 2147483648
        %v1701 = vxor.u32 %v1645, 2147483648
        %v1702 = vmul.f32 %v1698, 1.442695
        %v1703 = vpow.pop %v1702
        %v1704 = vmul.f32 %v1699, 1.442695
        %v1705 = vpow.pop %v1704
        %v1706 = vmul.f32 %v1700, 1.442695
        %v1707 = vpow.pop %v1706
        %v1708 = vmul.f32 %v1701, 1.442695
        %v1709 = vpow.pop %v1708
        %v1710 = vadd.f32 %v1703, 1.0
        %v1711 = vadd.f32 %v1705, 1.0
        %v1712 = vadd.f32 %v1707, 1.0
        %v1713 = vadd.f32 %v1709, 1.0
        %v1714 = vrcp.pop %v1710
        %v1715 = vmul.f32 1.0, %v1714
        %v1716 = vrcp.pop %v1711
        %v1717 = vmul.f32 1.0, %v1716
        %v1718 = vrcp.pop %v1712
        %v1719 = vmul.f32 1.0, %v1718
        %v1720 = vrcp.pop %v1713
        %v1721 = vmul.f32 1.0, %v1720
        %v1722 = vtanh.pop %v1646
        %v1723 = vtanh.pop %v1647
        %v1724 = vtanh.pop %v1648
        %v1725 = vtanh.pop %v1649
        %v1726 = vld [vmem:[%s324] sm:$0xff]
        %v1727 = vld [vmem:[%s324 + $0x8] sm:$0xff]
        %v1728 = vld [vmem:[%s324 + $0x10] sm:$0xff]
        %v1729 = vld [vmem:[%s324 + $0x18] sm:$0xff]
        %v1730 = vmul.f32 %v1691, %v1726
        %v1731 = vmul.f32 %v1693, %v1727
        %v1732 = vmul.f32 %v1695, %v1728
        %v1733 = vmul.f32 %v1697, %v1729
        %v1734 = vmul.f32 %v1667, %v1722
        %v1735 = vmul.f32 %v1669, %v1723
        %v1736 = vmul.f32 %v1671, %v1724
        %v1737 = vmul.f32 %v1673, %v1725
        %v1738 = vadd.f32 %v1730, %v1734
        %v1739 = vadd.f32 %v1731, %v1735
        %v1740 = vadd.f32 %v1732, %v1736
        %v1741 = vadd.f32 %v1733, %v1737
        %v1742 = vtanh.pop %v1738
        %v1743 = vtanh.pop %v1739
        %v1744 = vtanh.pop %v1740
        %v1745 = vtanh.pop %v1741
        %v1746 = vmul.f32 %v1715, %v1742
        %v1747 = vmul.f32 %v1717, %v1743
        %v1748 = vmul.f32 %v1719, %v1744
        %v1749 = vmul.f32 %v1721, %v1745
        %1750 = vst [vmem:[%s303] sm:$0xff] %v1746
        %1751 = vst [vmem:[%s303 + $0x8] sm:$0xff] %v1747
        %1752 = vst [vmem:[%s303 + $0x10] sm:$0xff] %v1748
        %1753 = vst [vmem:[%s303 + $0x18] sm:$0xff] %v1749
        %1754 = vst [vmem:[%s310] sm:$0xff] %v1738
        %1755 = vst [vmem:[%s310 + $0x8] sm:$0xff] %v1739
        %1756 = vst [vmem:[%s310 + $0x10] sm:$0xff] %v1740
        %1757 = vst [vmem:[%s310 + $0x18] sm:$0xff] %v1741
        %s1758 = sand.u32 %s174, 1
        %s1759 = scalar_lea.sflag [#allocation3], %s1758
        %s1760 = sand.u32 %s174, 1
        %s1761 = smul.addr %s1760, 32
        %s1762 = scalar_lea.vmem [#allocation2], %s1761
        %s1763 = sand.u32 %s200, 1
        %s1764 = scalar_lea.sflag [#allocation5], %s1763
        %s1765 = sand.u32 %s200, 1
        %s1766 = smul.addr %s1765, 32
        %s1767 = scalar_lea.vmem [#allocation4], %s1766
        // Predicated region
        $region45: #{tpu_custom_call.1} parent=43 // pred_check
          %p1768 = pneg %p184
        $region46: #{tpu_custom_call.1} parent=43 // pred_check_branch
          %1770 = sbr.rel (%p1768) target = $region48
        $region47: #{tpu_custom_call.1} parent=43 // pred_region
          %s1772 = ssub.s32 512, 512
          %1773 = vsyncadd %s1759, %s1772
          %s1774 = smul.addr %s25, 4
          %s1775 = smul.addr %s1774, 128
          %s1776 = scalar_lea.hbm %s6, %s1775
          %s1777 = sshll.u32 %s1762, 4
          %s1778 = int_to_ptr.vmem [resolvable:$true] %s1777
          %1783 = dma.vmem_to_hbm [thread:$0]  %s1778, 512, %s1776, %s1759, 128, 128, 8
        $region48: #{tpu_custom_call.1} parent=43 // pred_fallthru
          _
        // Predicated region
        $region49: #{tpu_custom_call.1} parent=43 // pred_check
          %p1784 = pneg %p210
        $region50: #{tpu_custom_call.1} parent=43 // pred_check_branch
          %1786 = sbr.rel (%p1784) target = $region52
        $region51: #{tpu_custom_call.1} parent=43 // pred_region
          %s1788 = ssub.s32 512, 512
          %1789 = vsyncadd %s1764, %s1788
          %s1790 = smul.addr %s25, 4
          %s1791 = smul.addr %s1790, 128
          %s1792 = scalar_lea.hbm %s7, %s1791
          %s1793 = sshll.u32 %s1767, 4
          %s1794 = int_to_ptr.vmem [resolvable:$true] %s1793
          %1799 = dma.vmem_to_hbm [thread:$0]  %s1794, 512, %s1792, %s1764, 128, 128, 8
        $region52: #{tpu_custom_call.1} parent=43 // pred_fallthru
          _
      $region44: #{tpu_custom_call.1} parent=5 // pred_fallthru
        _
      %p1800 = scmp.le.s32.totalorder 2, %s20
      // Predicated region
      $region53: #{tpu_custom_call.1} parent=5 // pred_check
        %p1801 = pneg %p1800
      $region54: #{tpu_custom_call.1} parent=5 // pred_check_branch
        %1803 = sbr.rel (%p1801) target = $region56
      $region55: #{tpu_custom_call.1} parent=5 // pred_region
        %s1804 = ssub.s32 %s20, 2
        // Predicated region
        $region57: #{tpu_custom_call.1} parent=55 // pred_check
          %p1805 = pneg %p190
        $region58: #{tpu_custom_call.1} parent=55 // pred_check_branch
          %1807 = sbr.rel (%p1805) target = $region60
        $region59: #{tpu_custom_call.1} parent=55 // pred_region
          %s1808 = sand.u32 %s175, 1
          %s1809 = scalar_lea.sflag [#allocation3], %s1808
          %s1810 = sand.u32 %s175, 1
          %s1811 = smul.addr %s1810, 32
          %s1812 = scalar_lea.vmem [#allocation2], %s1811
          %1813 = dma.done %s1809, 512
        $region60: #{tpu_custom_call.1} parent=55 // pred_fallthru
          _
        // Predicated region
        $region61: #{tpu_custom_call.1} parent=55 // pred_check
          %p1814 = pneg %p216
        $region62: #{tpu_custom_call.1} parent=55 // pred_check_branch
          %1816 = sbr.rel (%p1814) target = $region64
        $region63: #{tpu_custom_call.1} parent=55 // pred_region
          %s1817 = sand.u32 %s201, 1
          %s1818 = scalar_lea.sflag [#allocation5], %s1817
          %s1819 = sand.u32 %s201, 1
          %s1820 = smul.addr %s1819, 32
          %s1821 = scalar_lea.vmem [#allocation4], %s1820
          %1822 = dma.done %s1818, 512
        $region64: #{tpu_custom_call.1} parent=55 // pred_fallthru
          _
      $region56: #{tpu_custom_call.1} parent=5 // pred_fallthru
        _
    $region6: #{tpu_custom_call.1} parent=1 // loop_footer
      %s24 = sadd.s32 1, %s20
    $region7: #{tpu_custom_call.1} parent=1 // loop_footer_branch
      %19 = sbr.rel target = $region3
    $region8: #{tpu_custom_call.1} parent=1 // loop_exit
      _
    %1823 = vsyncpa [#allocation3], 1
    %s1824 = scalar_lea.sflag [#allocation3], 1
    %1825 = vsyncpa %s1824, 1
    %1826 = vsyncpa [#allocation5], 1
    %s1827 = scalar_lea.sflag [#allocation5], 1
    %1828 = vsyncpa %s1827, 1

</llo_original>
